<compile_context>
chip_gen: v5e
topology: v5e:2x2
jax: 0.10.0
libtpu: 0.0.40
codegen_flags: <defaults>
</compile_context>

<pallas_src>
import math
import functools

import jax
import jax.numpy as jnp
import numpy as np
from jax.experimental import pallas as pl
from jax.experimental.pallas import tpu as pltpu

EPS_LN = 1e-6


def _layernorm(x):
    # LayerNorm over last dim, no affine, eps=1e-6 (torch.nn.LayerNorm(..., elementwise_affine=False))
    mean = jnp.mean(x, axis=-1, keepdims=True)
    var = jnp.mean(jnp.square(x - mean), axis=-1, keepdims=True)
    return (x - mean) * jax.lax.rsqrt(var + EPS_LN)


def _gelu_tanh(x):
    # GELU tanh approximation (torch.nn.GELU(approximate='tanh'))
    c = math.sqrt(2.0 / math.pi)
    return 0.5 * x * (1.0 + jnp.tanh(c * (x + 0.044715 * x * x * x)))


# ----------------------------------------------------------------------------
# Fused kernel: one grid step == one batch element, everything VMEM-resident.
# ----------------------------------------------------------------------------
def fused_block_kernel(
        xa_ref, xb_ref, emb_a_ref, emb_b_ref,
        wqkv_ref, bqkv_ref, wout_ref, bout_ref,
        wf1_ref, bf1_ref, wf2_ref, bf2_ref,
        oa_ref, ob_ref,
        *, dim, num_heads, head_dim, seq_a):
    D = dim
    f32 = jnp.float32
    bf16 = jnp.bfloat16

    xa = xa_ref[...]                                    # (Na, D) f32
    xb = xb_ref[...]                                    # (Nb, D) f32
    emb_a = emb_a_ref[...]                              # (6, D)  f32, rows:
    emb_b = emb_b_ref[...]                              # [shift_msa, scale_msa, gate_msa,
                                                        #  shift_mlp, scale_mlp, gate_mlp]

    def row(e, i):                                      # cheap static sublane slice
        return e[i:i + 1, :]                            # (1, D)

    # --- AdaLN (MSA) modulation ------------------------------------------------
    na = _layernorm(xa) * (1.0 + row(emb_a, 1)) + row(emb_a, 0)
    nb = _layernorm(xb) * (1.0 + row(emb_b, 1)) + row(emb_b, 0)

    # --- Joint attention ---------------------------------------------------------
    # bf16 operands on the MXU, f32 accumulation.
    qkv_a = jnp.dot(na.astype(bf16), wqkv_ref[0],
                    preferred_element_type=f32) + bqkv_ref[0:1, :]
    qkv_b = jnp.dot(nb.astype(bf16), wqkv_ref[1],
                    preferred_element_type=f32) + bqkv_ref[1:2, :]

    # PyTorch: view(B,N,3H,hd).transpose(1,2).chunk(3,dim=1)
    #   -> q cols [0,D), k cols [D,2D), v cols [2D,3D); head h = cols [h*hd,(h+1)*hd)
    # Concatenate a/b tokens ONCE (hoisted out of the per-head loop).
    q = jnp.concatenate([qkv_a[:, 0:D],         qkv_b[:, 0:D]],         axis=0).astype(bf16)
    k = jnp.concatenate([qkv_a[:, D:2 * D],     qkv_b[:, D:2 * D]],     axis=0).astype(bf16)
    v = jnp.concatenate([qkv_a[:, 2 * D:3 * D], qkv_b[:, 2 * D:3 * D]], axis=0).astype(bf16)

    scale = 1.0 / math.sqrt(head_dim)
    head_outs = []
    for h in range(num_heads):                           # static unroll, static lane slices
        s, e = h * head_dim, (h + 1) * head_dim
        q_h, k_h, v_h = q[:, s:e], k[:, s:e], v[:, s:e]
        # contract on the feature axis of both operands -> no explicit transpose
        scores = jax.lax.dot_general(
            q_h, k_h, (((1,), (1,)), ((), ())),
            preferred_element_type=f32) * scale          # (S, S) f32
        scores = scores - jnp.max(scores, axis=-1, keepdims=True)
        p = jnp.exp(scores)
        p = p / jnp.sum(p, axis=-1, keepdims=True)       # exact normalization
        head_outs.append(jnp.dot(p.astype(bf16), v_h, preferred_element_type=f32))
    attn = jnp.concatenate(head_outs, axis=-1)           # (S, D) f32

    attn_a = jnp.dot(attn[0:seq_a, :].astype(bf16), wout_ref[0],
                     preferred_element_type=f32) + bout_ref[0:1, :]
    attn_b = jnp.dot(attn[seq_a:, :].astype(bf16), wout_ref[1],
                     preferred_element_type=f32) + bout_ref[1:2, :]

    # --- Gated attn residual + LayerNorm + AdaLN(MLP) + FF + gated residual -------
    def ff_branch(x, attn_out, emb, w1, b1, w2, b2):
        x = x + row(emb, 2) * attn_out                          # gate_msa
        nx = _layernorm(x) * (1.0 + row(emb, 4)) + row(emb, 3)  # scale_mlp, shift_mlp
        h = jnp.dot(nx.astype(bf16), w1, preferred_element_type=f32) + b1
        h = _gelu_tanh(h)
        y = jnp.dot(h.astype(bf16), w2, preferred_element_type=f32) + b2
        return x + row(emb, 5) * y                              # gate_mlp

    oa_ref[...] = ff_branch(xa, attn_a, emb_a,
                            wf1_ref[0], bf1_ref[0:1, :], wf2_ref[0], bf2_ref[0:1, :])
    ob_ref[...] = ff_branch(xb, attn_b, emb_b,
                            wf1_ref[1], bf1_ref[1:2, :], wf2_ref[1], bf2_ref[1:2, :])


def joint_transformer_block_forward(params, hidden_states_a, hidden_states_b,
                                    hidden_states_envmap, temb, num_heads):
    # norm1_b(hidden_states_envmap) in the reference forward is computed but never
    # consumed or returned -> envmap input is unused here.
    del hidden_states_envmap
    B, Na, D = hidden_states_a.shape
    _, Nb, _ = hidden_states_b.shape
    head_dim = D // num_heads

    # --- AdaLN embedding GEMMs hoisted out of the kernel (M=1 is pure MXU fill/drain)
    silu_t = temb * jax.nn.sigmoid(temb)                        # (B, D) f32
    w1a, b1a = params["norm1_a"]
    w1b, b1b = params["norm1_b"]
    emb_a = (silu_t @ w1a + b1a).reshape(B, 6, D)               # (B, 6, D)
    emb_b = (silu_t @ w1b + b1b).reshape(B, 6, D)

    # --- Pack weights: stack a/b pairs along a leading axis; bf16 MXU operands ----
    def stack_w(ka, kb):
        return jnp.stack([params[ka][0], params[kb][0]], axis=0).astype(jnp.bfloat16)

    def stack_b(ka, kb):
        return jnp.concatenate([params[ka][1], params[kb][1]], axis=0)   # (2, out) f32

    wqkv = stack_w("a_to_qkv", "b_to_qkv"); bqkv = stack_b("a_to_qkv", "b_to_qkv")
    wout = stack_w("a_to_out", "b_to_out"); bout = stack_b("a_to_out", "b_to_out")
    wf1 = stack_w("ff_a_1", "ff_b_1");      bf1 = stack_b("ff_a_1", "ff_b_1")
    wf2 = stack_w("ff_a_2", "ff_b_2");      bf2 = stack_b("ff_a_2", "ff_b_2")

    kern = functools.partial(fused_block_kernel, dim=D, num_heads=num_heads,
                             head_dim=head_dim, seq_a=Na)

    def cspec(shape):
        zeros = (0,) * len(shape)
        # constant index_map -> DMA'd once, VMEM-resident across the batch grid
        return pl.BlockSpec(shape, lambda bi: zeros)

    out_a, out_b = pl.pallas_call(
        kern,
        out_shape=(
            jax.ShapeDtypeStruct((B, Na, D), hidden_states_a.dtype),
            jax.ShapeDtypeStruct((B, Nb, D), hidden_states_b.dtype),
        ),
        grid=(B,),
        in_specs=[
            pl.BlockSpec((None, Na, D), lambda bi: (bi, 0, 0)),
            pl.BlockSpec((None, Nb, D), lambda bi: (bi, 0, 0)),
            pl.BlockSpec((None, 6, D), lambda bi: (bi, 0, 0)),
            pl.BlockSpec((None, 6, D), lambda bi: (bi, 0, 0)),
            cspec((2, D, 3 * D)), cspec((2, 3 * D)),
            cspec((2, D, D)),     cspec((2, D)),
            cspec((2, D, 4 * D)), cspec((2, 4 * D)),
            cspec((2, 4 * D, D)), cspec((2, D)),
        ],
        out_specs=[
            pl.BlockSpec((None, Na, D), lambda bi: (bi, 0, 0)),
            pl.BlockSpec((None, Nb, D), lambda bi: (bi, 0, 0)),
        ],
        compiler_params=pltpu.CompilerParams(
            dimension_semantics=("parallel",),
            vmem_limit_bytes=32 * 1024 * 1024),
    )(hidden_states_a, hidden_states_b, emb_a, emb_b,
      wqkv, bqkv, wout, bout, wf1, bf1, wf2, bf2)
    return out_a, out_b


# ----------------------------------------------------------------------------
# Pure-JAX f32 reference (mirrors the PyTorch forward) for a correctness check.
# ----------------------------------------------------------------------------
def reference_forward(params, xa, xb, temb, num_heads):
    def linear(x, wb):
        w, b = wb
        return x @ w + b

    def ln(x):
        mean = x.mean(-1, keepdims=True)
        var = ((x - mean) ** 2).mean(-1, keepdims=True)
        return (x - mean) / jnp.sqrt(var + EPS_LN)

    B, Na, D = xa.shape
    H = num_heads
    hd = D // H
    silu = temb * jax.nn.sigmoid(temb)
    emb_a = linear(silu, params["norm1_a"])[:, None, :]
    emb_b = linear(silu, params["norm1_b"])[:, None, :]

    def split6(e):
        return [e[..., i * D:(i + 1) * D] for i in range(6)]

    sh_a, sc_a, g_a, shm_a, scm_a, gm_a = split6(emb_a)
    sh_b, sc_b, g_b, shm_b, scm_b, gm_b = split6(emb_b)
    na = ln(xa) * (1 + sc_a) + sh_a
    nb = ln(xb) * (1 + sc_b) + sh_b

    def qkv(x, wb):
        y = linear(x, wb)
        b_, n_, _ = y.shape
        y = y.reshape(b_, n_, 3 * H, hd).transpose(0, 2, 1, 3)
        return y[:, :H], y[:, H:2 * H], y[:, 2 * H:]

    qa, ka, va = qkv(na, params["a_to_qkv"])
    qb, kb, vb = qkv(nb, params["b_to_qkv"])
    q = jnp.concatenate([qa, qb], axis=2)
    k = jnp.concatenate([ka, kb], axis=2)
    v = jnp.concatenate([va, vb], axis=2)
    scores = jnp.einsum("bhqd,bhkd->bhqk", q, k) / math.sqrt(hd)
    p = jax.nn.softmax(scores, axis=-1)
    o = jnp.einsum("bhqk,bhkd->bhqd", p, v)
    o = o.transpose(0, 2, 1, 3).reshape(B, -1, D)
    attn_a = linear(o[:, :Na], params["a_to_out"])
    attn_b = linear(o[:, Na:], params["b_to_out"])
    xa2 = xa + g_a * attn_a
    xb2 = xb + g_b * attn_b
    ya = linear(_gelu_tanh(linear(ln(xa2) * (1 + scm_a) + shm_a, params["ff_a_1"])), params["ff_a_2"])
    yb = linear(_gelu_tanh(linear(ln(xb2) * (1 + scm_b) + shm_b, params["ff_b_1"])), params["ff_b_2"])
    return xa2 + gm_a * ya, xb2 + gm_b * yb


# ----------------------------------------------------------------------------
# Parameters (deterministic, PyTorch Linear-style uniform init)
# ----------------------------------------------------------------------------
def _linear_params(key, din, dout):
    kw, kb = jax.random.split(key)
    bound = 1.0 / math.sqrt(din)
    w = jax.random.uniform(kw, (din, dout), jnp.float32, -bound, bound)
    b = jax.random.uniform(kb, (1, dout), jnp.float32, -bound, bound)
    return w, b


def init_params(key, dim):
    ks = jax.random.split(key, 10)
    return {
        "norm1_a": _linear_params(ks[0], dim, 6 * dim),
        "norm1_b": _linear_params(ks[1], dim, 6 * dim),
        "a_to_qkv": _linear_params(ks[2], dim, 3 * dim),
        "b_to_qkv": _linear_params(ks[3], dim, 3 * dim),
        "a_to_out": _linear_params(ks[4], dim, dim),
        "b_to_out": _linear_params(ks[5], dim, dim),
        "ff_a_1": _linear_params(ks[6], dim, 4 * dim),
        "ff_a_2": _linear_params(ks[7], 4 * dim, dim),
        "ff_b_1": _linear_params(ks[8], dim, 4 * dim),
        "ff_b_2": _linear_params(ks[9], 4 * dim, dim),
    }


if __name__ == "__main__":
    B, Na, Nb, Ne = 2, 16, 16, 8
    dim, num_heads = 64, 2  # head_dim = 32

    key = jax.random.PRNGKey(0)
    k_a, k_b, k_e, k_t, k_p = jax.random.split(key, 5)
    hidden_states_a = jax.random.normal(k_a, (B, Na, dim), jnp.float32)
    hidden_states_b = jax.random.normal(k_b, (B, Nb, dim), jnp.float32)
    hidden_states_envmap = jax.random.normal(k_e, (B, Ne, dim), jnp.float32)
    temb = jax.random.normal(k_t, (B, dim), jnp.float32)

    params = init_params(k_p, dim)

    out_a, out_b = joint_transformer_block_forward(
        params, hidden_states_a, hidden_states_b, hidden_states_envmap, temb, num_heads)
    jax.block_until_ready((out_a, out_b))

    assert out_a.shape == (B, Na, dim) and out_b.shape == (B, Nb, dim)

    # Correctness vs. pure-JAX f32 reference (tolerance covers bf16 MXU operands).
    ref_a, ref_b = reference_forward(params, hidden_states_a, hidden_states_b, temb, num_heads)
    np.testing.assert_allclose(np.asarray(out_a), np.asarray(ref_a), rtol=5e-2, atol=5e-2)
    np.testing.assert_allclose(np.asarray(out_b), np.asarray(ref_b), rtol=5e-2, atol=5e-2)

    print("KERNEL_OK")
</pallas_src>

<mosaic_0001>
module attributes {stable_mosaic.version = 11 : i64} {
  func.func @fused_block_kernel(%arg0: i32, %arg1: memref<1x16x64xf32, #tpu.memory_space<vmem>>, %arg2: memref<1x16x64xf32, #tpu.memory_space<vmem>>, %arg3: memref<1x6x64xf32, #tpu.memory_space<vmem>>, %arg4: memref<1x6x64xf32, #tpu.memory_space<vmem>>, %arg5: memref<2x64x192xbf16, #tpu.memory_space<vmem>>, %arg6: memref<2x192xf32, #tpu.memory_space<vmem>>, %arg7: memref<2x64x64xbf16, #tpu.memory_space<vmem>>, %arg8: memref<2x64xf32, #tpu.memory_space<vmem>>, %arg9: memref<2x64x256xbf16, #tpu.memory_space<vmem>>, %arg10: memref<2x256xf32, #tpu.memory_space<vmem>>, %arg11: memref<2x256x64xbf16, #tpu.memory_space<vmem>>, %arg12: memref<2x64xf32, #tpu.memory_space<vmem>>, %arg13: memref<1x16x64xf32, #tpu.memory_space<vmem>>, %arg14: memref<1x16x64xf32, #tpu.memory_space<vmem>>) attributes {dimension_semantics = [#tpu.dimension_semantics<parallel>], iteration_bounds = array<i64: 2>, scalar_prefetch = 0 : i64, scratch_operands = 0 : i64, tpu.core_type = #tpu.core_type<tc>, window_params = [{transform_indices = @transform_0, window_bounds = array<i64: 1, 16, 64>}, {transform_indices = @transform_1, window_bounds = array<i64: 1, 16, 64>}, {transform_indices = @transform_2, window_bounds = array<i64: 1, 6, 64>}, {transform_indices = @transform_3, window_bounds = array<i64: 1, 6, 64>}, {pipeline_mode = #tpu.pipeline_mode<synchronous>, transform_indices = @transform_4, window_bounds = array<i64: 2, 64, 192>}, {pipeline_mode = #tpu.pipeline_mode<synchronous>, transform_indices = @transform_5, window_bounds = array<i64: 2, 192>}, {pipeline_mode = #tpu.pipeline_mode<synchronous>, transform_indices = @transform_6, window_bounds = array<i64: 2, 64, 64>}, {pipeline_mode = #tpu.pipeline_mode<synchronous>, transform_indices = @transform_7, window_bounds = array<i64: 2, 64>}, {pipeline_mode = #tpu.pipeline_mode<synchronous>, transform_indices = @transform_8, window_bounds = array<i64: 2, 64, 256>}, {pipeline_mode = #tpu.pipeline_mode<synchronous>, transform_indices = @transform_9, window_bounds = array<i64: 2, 256>}, {pipeline_mode = #tpu.pipeline_mode<synchronous>, transform_indices = @transform_10, window_bounds = array<i64: 2, 256, 64>}, {pipeline_mode = #tpu.pipeline_mode<synchronous>, transform_indices = @transform_11, window_bounds = array<i64: 2, 64>}, {transform_indices = @transform_12, window_bounds = array<i64: 1, 16, 64>}, {transform_indices = @transform_13, window_bounds = array<i64: 1, 16, 64>}]} {
    %c0 = arith.constant 0 : index
    %c0_0 = arith.constant 0 : index
    %c0_1 = arith.constant 0 : index
    %0 = vector.load %arg1[%c0, %c0_0, %c0_1] : memref<1x16x64xf32, #tpu.memory_space<vmem>>, vector<1x16x64xf32>
    %1 = vector.shape_cast %0 : vector<1x16x64xf32> to vector<16x64xf32>
    %c0_2 = arith.constant 0 : index
    %c0_3 = arith.constant 0 : index
    %c0_4 = arith.constant 0 : index
    %2 = vector.load %arg2[%c0_2, %c0_3, %c0_4] : memref<1x16x64xf32, #tpu.memory_space<vmem>>, vector<1x16x64xf32>
    %3 = vector.shape_cast %2 : vector<1x16x64xf32> to vector<16x64xf32>
    %c0_5 = arith.constant 0 : index
    %c0_6 = arith.constant 0 : index
    %c0_7 = arith.constant 0 : index
    %4 = vector.load %arg3[%c0_5, %c0_6, %c0_7] : memref<1x6x64xf32, #tpu.memory_space<vmem>>, vector<1x6x64xf32>
    %5 = vector.shape_cast %4 : vector<1x6x64xf32> to vector<6x64xf32>
    %c0_8 = arith.constant 0 : index
    %c0_9 = arith.constant 0 : index
    %c0_10 = arith.constant 0 : index
    %6 = vector.load %arg4[%c0_8, %c0_9, %c0_10] : memref<1x6x64xf32, #tpu.memory_space<vmem>>, vector<1x6x64xf32>
    %7 = vector.shape_cast %6 : vector<1x6x64xf32> to vector<6x64xf32>
    %cst = arith.constant dense<0.000000e+00> : vector<16xf32>
    %8 = vector.multi_reduction <add>, %1, %cst [1] : vector<16x64xf32> to vector<16xf32>
    %9 = vector.shape_cast %8 : vector<16xf32> to vector<16x1xf32>
    %cst_11 = arith.constant 6.400000e+01 : f32
    %10 = vector.broadcast %cst_11 : f32 to vector<16x1xf32>
    %11 = arith.divf %9, %10 : vector<16x1xf32>
    %12 = vector.broadcast %11 : vector<16x1xf32> to vector<16x64xf32>
    %13 = arith.subf %1, %12 : vector<16x64xf32>
    %14 = arith.mulf %13, %13 : vector<16x64xf32>
    %cst_12 = arith.constant dense<0.000000e+00> : vector<16xf32>
    %15 = vector.multi_reduction <add>, %14, %cst_12 [1] : vector<16x64xf32> to vector<16xf32>
    %16 = vector.shape_cast %15 : vector<16xf32> to vector<16x1xf32>
    %cst_13 = arith.constant 6.400000e+01 : f32
    %17 = vector.broadcast %cst_13 : f32 to vector<16x1xf32>
    %18 = arith.divf %16, %17 : vector<16x1xf32>
    %19 = vector.broadcast %11 : vector<16x1xf32> to vector<16x64xf32>
    %20 = arith.subf %1, %19 : vector<16x64xf32>
    %cst_14 = arith.constant 9.99999997E-7 : f32
    %21 = vector.broadcast %cst_14 : f32 to vector<16x1xf32>
    %22 = arith.addf %18, %21 : vector<16x1xf32>
    %23 = math.rsqrt %22 : vector<16x1xf32>
    %24 = vector.broadcast %23 : vector<16x1xf32> to vector<16x64xf32>
    %25 = arith.mulf %20, %24 : vector<16x64xf32>
    %26 = vector.extract_strided_slice %5 {offsets = [1, 0], sizes = [1, 64], strides = [1, 1]} : vector<6x64xf32> to vector<1x64xf32>
    %cst_15 = arith.constant 1.000000e+00 : f32
    %27 = vector.broadcast %cst_15 : f32 to vector<1x64xf32>
    %28 = arith.addf %27, %26 : vector<1x64xf32>
    %29 = vector.broadcast %28 : vector<1x64xf32> to vector<16x64xf32>
    %30 = arith.mulf %25, %29 : vector<16x64xf32>
    %31 = vector.extract_strided_slice %5 {offsets = [0, 0], sizes = [1, 64], strides = [1, 1]} : vector<6x64xf32> to vector<1x64xf32>
    %32 = vector.broadcast %31 : vector<1x64xf32> to vector<16x64xf32>
    %33 = arith.addf %30, %32 : vector<16x64xf32>
    %cst_16 = arith.constant dense<0.000000e+00> : vector<16xf32>
    %34 = vector.multi_reduction <add>, %3, %cst_16 [1] : vector<16x64xf32> to vector<16xf32>
    %35 = vector.shape_cast %34 : vector<16xf32> to vector<16x1xf32>
    %cst_17 = arith.constant 6.400000e+01 : f32
    %36 = vector.broadcast %cst_17 : f32 to vector<16x1xf32>
    %37 = arith.divf %35, %36 : vector<16x1xf32>
    %38 = vector.broadcast %37 : vector<16x1xf32> to vector<16x64xf32>
    %39 = arith.subf %3, %38 : vector<16x64xf32>
    %40 = arith.mulf %39, %39 : vector<16x64xf32>
    %cst_18 = arith.constant dense<0.000000e+00> : vector<16xf32>
    %41 = vector.multi_reduction <add>, %40, %cst_18 [1] : vector<16x64xf32> to vector<16xf32>
    %42 = vector.shape_cast %41 : vector<16xf32> to vector<16x1xf32>
    %cst_19 = arith.constant 6.400000e+01 : f32
    %43 = vector.broadcast %cst_19 : f32 to vector<16x1xf32>
    %44 = arith.divf %42, %43 : vector<16x1xf32>
    %45 = vector.broadcast %37 : vector<16x1xf32> to vector<16x64xf32>
    %46 = arith.subf %3, %45 : vector<16x64xf32>
    %cst_20 = arith.constant 9.99999997E-7 : f32
    %47 = vector.broadcast %cst_20 : f32 to vector<16x1xf32>
    %48 = arith.addf %44, %47 : vector<16x1xf32>
    %49 = math.rsqrt %48 : vector<16x1xf32>
    %50 = vector.broadcast %49 : vector<16x1xf32> to vector<16x64xf32>
    %51 = arith.mulf %46, %50 : vector<16x64xf32>
    %52 = vector.extract_strided_slice %7 {offsets = [1, 0], sizes = [1, 64], strides = [1, 1]} : vector<6x64xf32> to vector<1x64xf32>
    %cst_21 = arith.constant 1.000000e+00 : f32
    %53 = vector.broadcast %cst_21 : f32 to vector<1x64xf32>
    %54 = arith.addf %53, %52 : vector<1x64xf32>
    %55 = vector.broadcast %54 : vector<1x64xf32> to vector<16x64xf32>
    %56 = arith.mulf %51, %55 : vector<16x64xf32>
    %57 = vector.extract_strided_slice %7 {offsets = [0, 0], sizes = [1, 64], strides = [1, 1]} : vector<6x64xf32> to vector<1x64xf32>
    %58 = vector.broadcast %57 : vector<1x64xf32> to vector<16x64xf32>
    %59 = arith.addf %56, %58 : vector<16x64xf32>
    %60 = arith.truncf %33 : vector<16x64xf32> to vector<16x64xbf16>
    %c0_22 = arith.constant 0 : index
    %c0_23 = arith.constant 0 : index
    %c0_24 = arith.constant 0 : index
    %61 = vector.load %arg5[%c0_22, %c0_23, %c0_24] : memref<2x64x192xbf16, #tpu.memory_space<vmem>>, vector<1x64x192xbf16>
    %62 = vector.shape_cast %61 : vector<1x64x192xbf16> to vector<64x192xbf16>
    %cst_25 = arith.constant dense<0.000000e+00> : vector<16x192xf32>
    %63 = tpu.matmul %60, %62, %cst_25 {dimension_numbers = #tpu.dot_dimension_numbers<[1], [0], [0], [1], [0, 0, 1, 1], [], []>} : vector<16x64xbf16>, vector<64x192xbf16>, vector<16x192xf32> -> vector<16x192xf32>
    %c0_26 = arith.constant 0 : index
    %c0_27 = arith.constant 0 : index
    %64 = vector.load %arg6[%c0_26, %c0_27] : memref<2x192xf32, #tpu.memory_space<vmem>>, vector<1x192xf32>
    %65 = vector.broadcast %64 : vector<1x192xf32> to vector<16x192xf32>
    %66 = arith.addf %63, %65 : vector<16x192xf32>
    %67 = arith.truncf %59 : vector<16x64xf32> to vector<16x64xbf16>
    %c1 = arith.constant 1 : index
    %c0_28 = arith.constant 0 : index
    %c0_29 = arith.constant 0 : index
    %68 = vector.load %arg5[%c1, %c0_28, %c0_29] : memref<2x64x192xbf16, #tpu.memory_space<vmem>>, vector<1x64x192xbf16>
    %69 = vector.shape_cast %68 : vector<1x64x192xbf16> to vector<64x192xbf16>
    %cst_30 = arith.constant dense<0.000000e+00> : vector<16x192xf32>
    %70 = tpu.matmul %67, %69, %cst_30 {dimension_numbers = #tpu.dot_dimension_numbers<[1], [0], [0], [1], [0, 0, 1, 1], [], []>} : vector<16x64xbf16>, vector<64x192xbf16>, vector<16x192xf32> -> vector<16x192xf32>
    %c1_31 = arith.constant 1 : index
    %c0_32 = arith.constant 0 : index
    %71 = vector.load %arg6[%c1_31, %c0_32] : memref<2x192xf32, #tpu.memory_space<vmem>>, vector<1x192xf32>
    %72 = vector.broadcast %71 : vector<1x192xf32> to vector<16x192xf32>
    %73 = arith.addf %70, %72 : vector<16x192xf32>
    %74 = vector.extract_strided_slice %66 {offsets = [0, 0], sizes = [16, 64], strides = [1, 1]} : vector<16x192xf32> to vector<16x64xf32>
    %75 = vector.extract_strided_slice %73 {offsets = [0, 0], sizes = [16, 64], strides = [1, 1]} : vector<16x192xf32> to vector<16x64xf32>
    %76 = tpu.concatenate %74, %75 in 0 : vector<16x64xf32>, vector<16x64xf32> -> vector<32x64xf32>
    %77 = arith.truncf %76 : vector<32x64xf32> to vector<32x64xbf16>
    %78 = vector.extract_strided_slice %66 {offsets = [0, 64], sizes = [16, 64], strides = [1, 1]} : vector<16x192xf32> to vector<16x64xf32>
    %79 = vector.extract_strided_slice %73 {offsets = [0, 64], sizes = [16, 64], strides = [1, 1]} : vector<16x192xf32> to vector<16x64xf32>
    %80 = tpu.concatenate %78, %79 in 0 : vector<16x64xf32>, vector<16x64xf32> -> vector<32x64xf32>
    %81 = arith.truncf %80 : vector<32x64xf32> to vector<32x64xbf16>
    %82 = vector.extract_strided_slice %66 {offsets = [0, 128], sizes = [16, 64], strides = [1, 1]} : vector<16x192xf32> to vector<16x64xf32>
    %83 = vector.extract_strided_slice %73 {offsets = [0, 128], sizes = [16, 64], strides = [1, 1]} : vector<16x192xf32> to vector<16x64xf32>
    %84 = tpu.concatenate %82, %83 in 0 : vector<16x64xf32>, vector<16x64xf32> -> vector<32x64xf32>
    %85 = arith.truncf %84 : vector<32x64xf32> to vector<32x64xbf16>
    %86 = vector.extract_strided_slice %77 {offsets = [0, 0], sizes = [32, 32], strides = [1, 1]} : vector<32x64xbf16> to vector<32x32xbf16>
    %87 = vector.extract_strided_slice %81 {offsets = [0, 0], sizes = [32, 32], strides = [1, 1]} : vector<32x64xbf16> to vector<32x32xbf16>
    %88 = vector.extract_strided_slice %85 {offsets = [0, 0], sizes = [32, 32], strides = [1, 1]} : vector<32x64xbf16> to vector<32x32xbf16>
    %cst_33 = arith.constant dense<0.000000e+00> : vector<32x32xf32>
    %89 = tpu.matmul %86, %87, %cst_33 {dimension_numbers = #tpu.dot_dimension_numbers<[1], [1], [0], [0], [0, 0, 1, 0], [], []>} : vector<32x32xbf16>, vector<32x32xbf16>, vector<32x32xf32> -> vector<32x32xf32>
    %cst_34 = arith.constant 0.176776692 : f32
    %90 = vector.broadcast %cst_34 : f32 to vector<32x32xf32>
    %91 = arith.mulf %89, %90 : vector<32x32xf32>
    %cst_35 = arith.constant dense<0xFF800000> : vector<32xf32>
    %92 = vector.multi_reduction <maximumf>, %91, %cst_35 [1] : vector<32x32xf32> to vector<32xf32>
    %93 = vector.shape_cast %92 : vector<32xf32> to vector<32x1xf32>
    %94 = vector.broadcast %93 : vector<32x1xf32> to vector<32x32xf32>
    %95 = arith.subf %91, %94 : vector<32x32xf32>
    %96 = math.exp %95 : vector<32x32xf32>
    %cst_36 = arith.constant dense<0.000000e+00> : vector<32xf32>
    %97 = vector.multi_reduction <add>, %96, %cst_36 [1] : vector<32x32xf32> to vector<32xf32>
    %98 = vector.shape_cast %97 : vector<32xf32> to vector<32x1xf32>
    %99 = vector.broadcast %98 : vector<32x1xf32> to vector<32x32xf32>
    %100 = arith.divf %96, %99 : vector<32x32xf32>
    %101 = arith.truncf %100 : vector<32x32xf32> to vector<32x32xbf16>
    %cst_37 = arith.constant dense<0.000000e+00> : vector<32x32xf32>
    %102 = tpu.matmul %101, %88, %cst_37 {dimension_numbers = #tpu.dot_dimension_numbers<[1], [0], [0], [1], [0, 0, 1, 1], [], []>} : vector<32x32xbf16>, vector<32x32xbf16>, vector<32x32xf32> -> vector<32x32xf32>
    %103 = vector.extract_strided_slice %77 {offsets = [0, 32], sizes = [32, 32], strides = [1, 1]} : vector<32x64xbf16> to vector<32x32xbf16>
    %104 = vector.extract_strided_slice %81 {offsets = [0, 32], sizes = [32, 32], strides = [1, 1]} : vector<32x64xbf16> to vector<32x32xbf16>
    %105 = vector.extract_strided_slice %85 {offsets = [0, 32], sizes = [32, 32], strides = [1, 1]} : vector<32x64xbf16> to vector<32x32xbf16>
    %cst_38 = arith.constant dense<0.000000e+00> : vector<32x32xf32>
    %106 = tpu.matmul %103, %104, %cst_38 {dimension_numbers = #tpu.dot_dimension_numbers<[1], [1], [0], [0], [0, 0, 1, 0], [], []>} : vector<32x32xbf16>, vector<32x32xbf16>, vector<32x32xf32> -> vector<32x32xf32>
    %cst_39 = arith.constant 0.176776692 : f32
    %107 = vector.broadcast %cst_39 : f32 to vector<32x32xf32>
    %108 = arith.mulf %106, %107 : vector<32x32xf32>
    %cst_40 = arith.constant dense<0xFF800000> : vector<32xf32>
    %109 = vector.multi_reduction <maximumf>, %108, %cst_40 [1] : vector<32x32xf32> to vector<32xf32>
    %110 = vector.shape_cast %109 : vector<32xf32> to vector<32x1xf32>
    %111 = vector.broadcast %110 : vector<32x1xf32> to vector<32x32xf32>
    %112 = arith.subf %108, %111 : vector<32x32xf32>
    %113 = math.exp %112 : vector<32x32xf32>
    %cst_41 = arith.constant dense<0.000000e+00> : vector<32xf32>
    %114 = vector.multi_reduction <add>, %113, %cst_41 [1] : vector<32x32xf32> to vector<32xf32>
    %115 = vector.shape_cast %114 : vector<32xf32> to vector<32x1xf32>
    %116 = vector.broadcast %115 : vector<32x1xf32> to vector<32x32xf32>
    %117 = arith.divf %113, %116 : vector<32x32xf32>
    %118 = arith.truncf %117 : vector<32x32xf32> to vector<32x32xbf16>
    %cst_42 = arith.constant dense<0.000000e+00> : vector<32x32xf32>
    %119 = tpu.matmul %118, %105, %cst_42 {dimension_numbers = #tpu.dot_dimension_numbers<[1], [0], [0], [1], [0, 0, 1, 1], [], []>} : vector<32x32xbf16>, vector<32x32xbf16>, vector<32x32xf32> -> vector<32x32xf32>
    %120 = tpu.concatenate %102, %119 in 1 : vector<32x32xf32>, vector<32x32xf32> -> vector<32x64xf32>
    %121 = vector.extract_strided_slice %120 {offsets = [0, 0], sizes = [16, 64], strides = [1, 1]} : vector<32x64xf32> to vector<16x64xf32>
    %122 = arith.truncf %121 : vector<16x64xf32> to vector<16x64xbf16>
    %c0_43 = arith.constant 0 : index
    %c0_44 = arith.constant 0 : index
    %c0_45 = arith.constant 0 : index
    %123 = vector.load %arg7[%c0_43, %c0_44, %c0_45] : memref<2x64x64xbf16, #tpu.memory_space<vmem>>, vector<1x64x64xbf16>
    %124 = vector.shape_cast %123 : vector<1x64x64xbf16> to vector<64x64xbf16>
    %cst_46 = arith.constant dense<0.000000e+00> : vector<16x64xf32>
    %125 = tpu.matmul %122, %124, %cst_46 {dimension_numbers = #tpu.dot_dimension_numbers<[1], [0], [0], [1], [0, 0, 1, 1], [], []>} : vector<16x64xbf16>, vector<64x64xbf16>, vector<16x64xf32> -> vector<16x64xf32>
    %c0_47 = arith.constant 0 : index
    %c0_48 = arith.constant 0 : index
    %126 = vector.load %arg8[%c0_47, %c0_48] : memref<2x64xf32, #tpu.memory_space<vmem>>, vector<1x64xf32>
    %127 = vector.broadcast %126 : vector<1x64xf32> to vector<16x64xf32>
    %128 = arith.addf %125, %127 : vector<16x64xf32>
    %129 = vector.extract_strided_slice %120 {offsets = [16, 0], sizes = [16, 64], strides = [1, 1]} : vector<32x64xf32> to vector<16x64xf32>
    %130 = arith.truncf %129 : vector<16x64xf32> to vector<16x64xbf16>
    %c1_49 = arith.constant 1 : index
    %c0_50 = arith.constant 0 : index
    %c0_51 = arith.constant 0 : index
    %131 = vector.load %arg7[%c1_49, %c0_50, %c0_51] : memref<2x64x64xbf16, #tpu.memory_space<vmem>>, vector<1x64x64xbf16>
    %132 = vector.shape_cast %131 : vector<1x64x64xbf16> to vector<64x64xbf16>
    %cst_52 = arith.constant dense<0.000000e+00> : vector<16x64xf32>
    %133 = tpu.matmul %130, %132, %cst_52 {dimension_numbers = #tpu.dot_dimension_numbers<[1], [0], [0], [1], [0, 0, 1, 1], [], []>} : vector<16x64xbf16>, vector<64x64xbf16>, vector<16x64xf32> -> vector<16x64xf32>
    %c1_53 = arith.constant 1 : index
    %c0_54 = arith.constant 0 : index
    %134 = vector.load %arg8[%c1_53, %c0_54] : memref<2x64xf32, #tpu.memory_space<vmem>>, vector<1x64xf32>
    %135 = vector.broadcast %134 : vector<1x64xf32> to vector<16x64xf32>
    %136 = arith.addf %133, %135 : vector<16x64xf32>
    %c0_55 = arith.constant 0 : index
    %c0_56 = arith.constant 0 : index
    %c0_57 = arith.constant 0 : index
    %137 = vector.load %arg9[%c0_55, %c0_56, %c0_57] : memref<2x64x256xbf16, #tpu.memory_space<vmem>>, vector<1x64x256xbf16>
    %138 = vector.shape_cast %137 : vector<1x64x256xbf16> to vector<64x256xbf16>
    %c0_58 = arith.constant 0 : index
    %c0_59 = arith.constant 0 : index
    %139 = vector.load %arg10[%c0_58, %c0_59] : memref<2x256xf32, #tpu.memory_space<vmem>>, vector<1x256xf32>
    %c0_60 = arith.constant 0 : index
    %c0_61 = arith.constant 0 : index
    %c0_62 = arith.constant 0 : index
    %140 = vector.load %arg11[%c0_60, %c0_61, %c0_62] : memref<2x256x64xbf16, #tpu.memory_space<vmem>>, vector<1x256x64xbf16>
    %141 = vector.shape_cast %140 : vector<1x256x64xbf16> to vector<256x64xbf16>
    %c0_63 = arith.constant 0 : index
    %c0_64 = arith.constant 0 : index
    %142 = vector.load %arg12[%c0_63, %c0_64] : memref<2x64xf32, #tpu.memory_space<vmem>>, vector<1x64xf32>
    %143 = vector.extract_strided_slice %5 {offsets = [2, 0], sizes = [1, 64], strides = [1, 1]} : vector<6x64xf32> to vector<1x64xf32>
    %144 = vector.broadcast %143 : vector<1x64xf32> to vector<16x64xf32>
    %145 = arith.mulf %144, %128 : vector<16x64xf32>
    %146 = arith.addf %1, %145 : vector<16x64xf32>
    %cst_65 = arith.constant dense<0.000000e+00> : vector<16xf32>
    %147 = vector.multi_reduction <add>, %146, %cst_65 [1] : vector<16x64xf32> to vector<16xf32>
    %148 = vector.shape_cast %147 : vector<16xf32> to vector<16x1xf32>
    %cst_66 = arith.constant 6.400000e+01 : f32
    %149 = vector.broadcast %cst_66 : f32 to vector<16x1xf32>
    %150 = arith.divf %148, %149 : vector<16x1xf32>
    %151 = vector.broadcast %150 : vector<16x1xf32> to vector<16x64xf32>
    %152 = arith.subf %146, %151 : vector<16x64xf32>
    %153 = arith.mulf %152, %152 : vector<16x64xf32>
    %cst_67 = arith.constant dense<0.000000e+00> : vector<16xf32>
    %154 = vector.multi_reduction <add>, %153, %cst_67 [1] : vector<16x64xf32> to vector<16xf32>
    %155 = vector.shape_cast %154 : vector<16xf32> to vector<16x1xf32>
    %cst_68 = arith.constant 6.400000e+01 : f32
    %156 = vector.broadcast %cst_68 : f32 to vector<16x1xf32>
    %157 = arith.divf %155, %156 : vector<16x1xf32>
    %158 = vector.broadcast %150 : vector<16x1xf32> to vector<16x64xf32>
    %159 = arith.subf %146, %158 : vector<16x64xf32>
    %cst_69 = arith.constant 9.99999997E-7 : f32
    %160 = vector.broadcast %cst_69 : f32 to vector<16x1xf32>
    %161 = arith.addf %157, %160 : vector<16x1xf32>
    %162 = math.rsqrt %161 : vector<16x1xf32>
    %163 = vector.broadcast %162 : vector<16x1xf32> to vector<16x64xf32>
    %164 = arith.mulf %159, %163 : vector<16x64xf32>
    %165 = vector.extract_strided_slice %5 {offsets = [4, 0], sizes = [1, 64], strides = [1, 1]} : vector<6x64xf32> to vector<1x64xf32>
    %cst_70 = arith.constant 1.000000e+00 : f32
    %166 = vector.broadcast %cst_70 : f32 to vector<1x64xf32>
    %167 = arith.addf %166, %165 : vector<1x64xf32>
    %168 = vector.broadcast %167 : vector<1x64xf32> to vector<16x64xf32>
    %169 = arith.mulf %164, %168 : vector<16x64xf32>
    %170 = vector.extract_strided_slice %5 {offsets = [3, 0], sizes = [1, 64], strides = [1, 1]} : vector<6x64xf32> to vector<1x64xf32>
    %171 = vector.broadcast %170 : vector<1x64xf32> to vector<16x64xf32>
    %172 = arith.addf %169, %171 : vector<16x64xf32>
    %173 = arith.truncf %172 : vector<16x64xf32> to vector<16x64xbf16>
    %cst_71 = arith.constant dense<0.000000e+00> : vector<16x256xf32>
    %174 = tpu.matmul %173, %138, %cst_71 {dimension_numbers = #tpu.dot_dimension_numbers<[1], [0], [0], [1], [0, 0, 1, 1], [], []>} : vector<16x64xbf16>, vector<64x256xbf16>, vector<16x256xf32> -> vector<16x256xf32>
    %175 = vector.broadcast %139 : vector<1x256xf32> to vector<16x256xf32>
    %176 = arith.addf %174, %175 : vector<16x256xf32>
    %cst_72 = arith.constant 5.000000e-01 : f32
    %177 = vector.broadcast %cst_72 : f32 to vector<16x256xf32>
    %178 = arith.mulf %177, %176 : vector<16x256xf32>
    %cst_73 = arith.constant 4.471500e-02 : f32
    %179 = vector.broadcast %cst_73 : f32 to vector<16x256xf32>
    %180 = arith.mulf %179, %176 : vector<16x256xf32>
    %181 = arith.mulf %180, %176 : vector<16x256xf32>
    %182 = arith.mulf %181, %176 : vector<16x256xf32>
    %183 = arith.addf %176, %182 : vector<16x256xf32>
    %cst_74 = arith.constant 0.797884583 : f32
    %184 = vector.broadcast %cst_74 : f32 to vector<16x256xf32>
    %185 = arith.mulf %184, %183 : vector<16x256xf32>
    %186 = math.tanh %185 : vector<16x256xf32>
    %cst_75 = arith.constant 1.000000e+00 : f32
    %187 = vector.broadcast %cst_75 : f32 to vector<16x256xf32>
    %188 = arith.addf %187, %186 : vector<16x256xf32>
    %189 = arith.mulf %178, %188 : vector<16x256xf32>
    %190 = arith.truncf %189 : vector<16x256xf32> to vector<16x256xbf16>
    %cst_76 = arith.constant dense<0.000000e+00> : vector<16x64xf32>
    %191 = tpu.matmul %190, %141, %cst_76 {dimension_numbers = #tpu.dot_dimension_numbers<[1], [0], [0], [1], [0, 0, 1, 1], [], []>} : vector<16x256xbf16>, vector<256x64xbf16>, vector<16x64xf32> -> vector<16x64xf32>
    %192 = vector.broadcast %142 : vector<1x64xf32> to vector<16x64xf32>
    %193 = arith.addf %191, %192 : vector<16x64xf32>
    %194 = vector.extract_strided_slice %5 {offsets = [5, 0], sizes = [1, 64], strides = [1, 1]} : vector<6x64xf32> to vector<1x64xf32>
    %195 = vector.broadcast %194 : vector<1x64xf32> to vector<16x64xf32>
    %196 = arith.mulf %195, %193 : vector<16x64xf32>
    %197 = arith.addf %146, %196 : vector<16x64xf32>
    %c0_77 = arith.constant 0 : index
    %c0_78 = arith.constant 0 : index
    %c0_79 = arith.constant 0 : index
    %198 = vector.load %arg13[%c0_77, %c0_78, %c0_79] : memref<1x16x64xf32, #tpu.memory_space<vmem>>, vector<1x16x64xf32>
    %199 = vector.shape_cast %198 : vector<1x16x64xf32> to vector<16x64xf32>
    %200 = vector.shape_cast %197 : vector<16x64xf32> to vector<1x16x64xf32>
    tpu.vector_store %arg13[%c0_77, %c0_78, %c0_79], %200 {strides = array<i32>} : memref<1x16x64xf32, #tpu.memory_space<vmem>>, vector<1x16x64xf32>,
    %c1_80 = arith.constant 1 : index
    %c0_81 = arith.constant 0 : index
    %c0_82 = arith.constant 0 : index
    %201 = vector.load %arg9[%c1_80, %c0_81, %c0_82] : memref<2x64x256xbf16, #tpu.memory_space<vmem>>, vector<1x64x256xbf16>
    %202 = vector.shape_cast %201 : vector<1x64x256xbf16> to vector<64x256xbf16>
    %c1_83 = arith.constant 1 : index
    %c0_84 = arith.constant 0 : index
    %203 = vector.load %arg10[%c1_83, %c0_84] : memref<2x256xf32, #tpu.memory_space<vmem>>, vector<1x256xf32>
    %c1_85 = arith.constant 1 : index
    %c0_86 = arith.constant 0 : index
    %c0_87 = arith.constant 0 : index
    %204 = vector.load %arg11[%c1_85, %c0_86, %c0_87] : memref<2x256x64xbf16, #tpu.memory_space<vmem>>, vector<1x256x64xbf16>
    %205 = vector.shape_cast %204 : vector<1x256x64xbf16> to vector<256x64xbf16>
    %c1_88 = arith.constant 1 : index
    %c0_89 = arith.constant 0 : index
    %206 = vector.load %arg12[%c1_88, %c0_89] : memref<2x64xf32, #tpu.memory_space<vmem>>, vector<1x64xf32>
    %207 = vector.extract_strided_slice %7 {offsets = [2, 0], sizes = [1, 64], strides = [1, 1]} : vector<6x64xf32> to vector<1x64xf32>
    %208 = vector.broadcast %207 : vector<1x64xf32> to vector<16x64xf32>
    %209 = arith.mulf %208, %136 : vector<16x64xf32>
    %210 = arith.addf %3, %209 : vector<16x64xf32>
    %cst_90 = arith.constant dense<0.000000e+00> : vector<16xf32>
    %211 = vector.multi_reduction <add>, %210, %cst_90 [1] : vector<16x64xf32> to vector<16xf32>
    %212 = vector.shape_cast %211 : vector<16xf32> to vector<16x1xf32>
    %cst_91 = arith.constant 6.400000e+01 : f32
    %213 = vector.broadcast %cst_91 : f32 to vector<16x1xf32>
    %214 = arith.divf %212, %213 : vector<16x1xf32>
    %215 = vector.broadcast %214 : vector<16x1xf32> to vector<16x64xf32>
    %216 = arith.subf %210, %215 : vector<16x64xf32>
    %217 = arith.mulf %216, %216 : vector<16x64xf32>
    %cst_92 = arith.constant dense<0.000000e+00> : vector<16xf32>
    %218 = vector.multi_reduction <add>, %217, %cst_92 [1] : vector<16x64xf32> to vector<16xf32>
    %219 = vector.shape_cast %218 : vector<16xf32> to vector<16x1xf32>
    %cst_93 = arith.constant 6.400000e+01 : f32
    %220 = vector.broadcast %cst_93 : f32 to vector<16x1xf32>
    %221 = arith.divf %219, %220 : vector<16x1xf32>
    %222 = vector.broadcast %214 : vector<16x1xf32> to vector<16x64xf32>
    %223 = arith.subf %210, %222 : vector<16x64xf32>
    %cst_94 = arith.constant 9.99999997E-7 : f32
    %224 = vector.broadcast %cst_94 : f32 to vector<16x1xf32>
    %225 = arith.addf %221, %224 : vector<16x1xf32>
    %226 = math.rsqrt %225 : vector<16x1xf32>
    %227 = vector.broadcast %226 : vector<16x1xf32> to vector<16x64xf32>
    %228 = arith.mulf %223, %227 : vector<16x64xf32>
    %229 = vector.extract_strided_slice %7 {offsets = [4, 0], sizes = [1, 64], strides = [1, 1]} : vector<6x64xf32> to vector<1x64xf32>
    %cst_95 = arith.constant 1.000000e+00 : f32
    %230 = vector.broadcast %cst_95 : f32 to vector<1x64xf32>
    %231 = arith.addf %230, %229 : vector<1x64xf32>
    %232 = vector.broadcast %231 : vector<1x64xf32> to vector<16x64xf32>
    %233 = arith.mulf %228, %232 : vector<16x64xf32>
    %234 = vector.extract_strided_slice %7 {offsets = [3, 0], sizes = [1, 64], strides = [1, 1]} : vector<6x64xf32> to vector<1x64xf32>
    %235 = vector.broadcast %234 : vector<1x64xf32> to vector<16x64xf32>
    %236 = arith.addf %233, %235 : vector<16x64xf32>
    %237 = arith.truncf %236 : vector<16x64xf32> to vector<16x64xbf16>
    %cst_96 = arith.constant dense<0.000000e+00> : vector<16x256xf32>
    %238 = tpu.matmul %237, %202, %cst_96 {dimension_numbers = #tpu.dot_dimension_numbers<[1], [0], [0], [1], [0, 0, 1, 1], [], []>} : vector<16x64xbf16>, vector<64x256xbf16>, vector<16x256xf32> -> vector<16x256xf32>
    %239 = vector.broadcast %203 : vector<1x256xf32> to vector<16x256xf32>
    %240 = arith.addf %238, %239 : vector<16x256xf32>
    %cst_97 = arith.constant 5.000000e-01 : f32
    %241 = vector.broadcast %cst_97 : f32 to vector<16x256xf32>
    %242 = arith.mulf %241, %240 : vector<16x256xf32>
    %cst_98 = arith.constant 4.471500e-02 : f32
    %243 = vector.broadcast %cst_98 : f32 to vector<16x256xf32>
    %244 = arith.mulf %243, %240 : vector<16x256xf32>
    %245 = arith.mulf %244, %240 : vector<16x256xf32>
    %246 = arith.mulf %245, %240 : vector<16x256xf32>
    %247 = arith.addf %240, %246 : vector<16x256xf32>
    %cst_99 = arith.constant 0.797884583 : f32
    %248 = vector.broadcast %cst_99 : f32 to vector<16x256xf32>
    %249 = arith.mulf %248, %247 : vector<16x256xf32>
    %250 = math.tanh %249 : vector<16x256xf32>
    %cst_100 = arith.constant 1.000000e+00 : f32
    %251 = vector.broadcast %cst_100 : f32 to vector<16x256xf32>
    %252 = arith.addf %251, %250 : vector<16x256xf32>
    %253 = arith.mulf %242, %252 : vector<16x256xf32>
    %254 = arith.truncf %253 : vector<16x256xf32> to vector<16x256xbf16>
    %cst_101 = arith.constant dense<0.000000e+00> : vector<16x64xf32>
    %255 = tpu.matmul %254, %205, %cst_101 {dimension_numbers = #tpu.dot_dimension_numbers<[1], [0], [0], [1], [0, 0, 1, 1], [], []>} : vector<16x256xbf16>, vector<256x64xbf16>, vector<16x64xf32> -> vector<16x64xf32>
    %256 = vector.broadcast %206 : vector<1x64xf32> to vector<16x64xf32>
    %257 = arith.addf %255, %256 : vector<16x64xf32>
    %258 = vector.extract_strided_slice %7 {offsets = [5, 0], sizes = [1, 64], strides = [1, 1]} : vector<6x64xf32> to vector<1x64xf32>
    %259 = vector.broadcast %258 : vector<1x64xf32> to vector<16x64xf32>
    %260 = arith.mulf %259, %257 : vector<16x64xf32>
    %261 = arith.addf %210, %260 : vector<16x64xf32>
    %c0_102 = arith.constant 0 : index
    %c0_103 = arith.constant 0 : index
    %c0_104 = arith.constant 0 : index
    %262 = vector.load %arg14[%c0_102, %c0_103, %c0_104] : memref<1x16x64xf32, #tpu.memory_space<vmem>>, vector<1x16x64xf32>
    %263 = vector.shape_cast %262 : vector<1x16x64xf32> to vector<16x64xf32>
    %264 = vector.shape_cast %261 : vector<16x64xf32> to vector<1x16x64xf32>
    tpu.vector_store %arg14[%c0_102, %c0_103, %c0_104], %264 {strides = array<i32>} : memref<1x16x64xf32, #tpu.memory_space<vmem>>, vector<1x16x64xf32>,
    return
  }
  func.func @transform_0(%arg0: i32) -> (i32, i32, i32) {
    %c0_i32 = arith.constant 0 : i32
    %c0_i32_0 = arith.constant 0 : i32
    %c0_i32_1 = arith.constant 0 : i32
    return %arg0, %c0_i32, %c0_i32_0 : i32, i32, i32
  }
  func.func @transform_1(%arg0: i32) -> (i32, i32, i32) {
    %c0_i32 = arith.constant 0 : i32
    %c0_i32_0 = arith.constant 0 : i32
    %c0_i32_1 = arith.constant 0 : i32
    return %arg0, %c0_i32, %c0_i32_0 : i32, i32, i32
  }
  func.func @transform_2(%arg0: i32) -> (i32, i32, i32) {
    %c0_i32 = arith.constant 0 : i32
    %c0_i32_0 = arith.constant 0 : i32
    %c0_i32_1 = arith.constant 0 : i32
    return %arg0, %c0_i32, %c0_i32_0 : i32, i32, i32
  }
  func.func @transform_3(%arg0: i32) -> (i32, i32, i32) {
    %c0_i32 = arith.constant 0 : i32
    %c0_i32_0 = arith.constant 0 : i32
    %c0_i32_1 = arith.constant 0 : i32
    return %arg0, %c0_i32, %c0_i32_0 : i32, i32, i32
  }
  func.func @transform_4(%arg0: i32) -> (i32, i32, i32) {
    %c0_i32 = arith.constant 0 : i32
    %c0_i32_0 = arith.constant 0 : i32
    %c0_i32_1 = arith.constant 0 : i32
    %c0_i32_2 = arith.constant 0 : i32
    return %c0_i32, %c0_i32_0, %c0_i32_1 : i32, i32, i32
  }
  func.func @transform_5(%arg0: i32) -> (i32, i32) {
    %c0_i32 = arith.constant 0 : i32
    %c0_i32_0 = arith.constant 0 : i32
    %c0_i32_1 = arith.constant 0 : i32
    return %c0_i32, %c0_i32_0 : i32, i32
  }
  func.func @transform_6(%arg0: i32) -> (i32, i32, i32) {
    %c0_i32 = arith.constant 0 : i32
    %c0_i32_0 = arith.constant 0 : i32
    %c0_i32_1 = arith.constant 0 : i32
    %c0_i32_2 = arith.constant 0 : i32
    return %c0_i32, %c0_i32_0, %c0_i32_1 : i32, i32, i32
  }
  func.func @transform_7(%arg0: i32) -> (i32, i32) {
    %c0_i32 = arith.constant 0 : i32
    %c0_i32_0 = arith.constant 0 : i32
    %c0_i32_1 = arith.constant 0 : i32
    return %c0_i32, %c0_i32_0 : i32, i32
  }
  func.func @transform_8(%arg0: i32) -> (i32, i32, i32) {
    %c0_i32 = arith.constant 0 : i32
    %c0_i32_0 = arith.constant 0 : i32
    %c0_i32_1 = arith.constant 0 : i32
    %c0_i32_2 = arith.constant 0 : i32
    return %c0_i32, %c0_i32_0, %c0_i32_1 : i32, i32, i32
  }
  func.func @transform_9(%arg0: i32) -> (i32, i32) {
    %c0_i32 = arith.constant 0 : i32
    %c0_i32_0 = arith.constant 0 : i32
    %c0_i32_1 = arith.constant 0 : i32
    return %c0_i32, %c0_i32_0 : i32, i32
  }
  func.func @transform_10(%arg0: i32) -> (i32, i32, i32) {
    %c0_i32 = arith.constant 0 : i32
    %c0_i32_0 = arith.constant 0 : i32
    %c0_i32_1 = arith.constant 0 : i32
    %c0_i32_2 = arith.constant 0 : i32
    return %c0_i32, %c0_i32_0, %c0_i32_1 : i32, i32, i32
  }
  func.func @transform_11(%arg0: i32) -> (i32, i32) {
    %c0_i32 = arith.constant 0 : i32
    %c0_i32_0 = arith.constant 0 : i32
    %c0_i32_1 = arith.constant 0 : i32
    return %c0_i32, %c0_i32_0 : i32, i32
  }
  func.func @transform_12(%arg0: i32) -> (i32, i32, i32) {
    %c0_i32 = arith.constant 0 : i32
    %c0_i32_0 = arith.constant 0 : i32
    %c0_i32_1 = arith.constant 0 : i32
    return %arg0, %c0_i32, %c0_i32_0 : i32, i32, i32
  }
  func.func @transform_13(%arg0: i32) -> (i32, i32, i32) {
    %c0_i32 = arith.constant 0 : i32
    %c0_i32_0 = arith.constant 0 : i32
    %c0_i32_1 = arith.constant 0 : i32
    return %arg0, %c0_i32, %c0_i32_0 : i32, i32, i32
  }
}

</mosaic_0001>

<llo_original>
// kernel: tpu_custom_call.1
$region0: #{tpu_custom_call.1}
  #allocation0 [shape = 'u32[]', space=smem, size = 0x4, offset = 0x4, fixed_abs, tag = 'smem constant byte address 0x4 - core index']
  #allocation1 [shape = 'u32[72,128]{1,0:T(1,128)}', space=vmem, size = 0x9000, scoped, tag = 'internal scratch']
  %s0 = inlined_call_operand.vmem [shape: f32[2,16,64], index: 0, kind: input, shape index: {}]
  %s1 = inlined_call_operand.vmem [shape: f32[2,16,64], index: 1, kind: input, shape index: {}]
  %s2 = inlined_call_operand.vmem [shape: f32[2,6,64], index: 2, kind: input, shape index: {}]
  %s3 = inlined_call_operand.vmem [shape: f32[2,6,64], index: 3, kind: input, shape index: {}]
  %s4 = inlined_call_operand.vmem [shape: bf16[2,64,192], index: 4, kind: input, shape index: {}]
  %s5 = inlined_call_operand.vmem [shape: f32[2,192], index: 5, kind: input, shape index: {}]
  %s6 = inlined_call_operand.vmem [shape: bf16[2,64,64], index: 6, kind: input, shape index: {}]
  %s7 = inlined_call_operand.vmem [shape: f32[2,64], index: 7, kind: input, shape index: {}]
  %s8 = inlined_call_operand.vmem [shape: bf16[2,64,256], index: 8, kind: input, shape index: {}]
  %s9 = inlined_call_operand.vmem [shape: f32[2,256], index: 9, kind: input, shape index: {}]
  %s10 = inlined_call_operand.vmem [shape: bf16[2,256,64], index: 10, kind: input, shape index: {}]
  %s11 = inlined_call_operand.vmem [shape: f32[2,64], index: 11, kind: input, shape index: {}]
  %s12 = inlined_call_operand.hbm [shape: f32[2,16,64], index: 12, kind: output, shape index: {0}]
  %s13 = inlined_call_operand.hbm [shape: f32[2,16,64], index: 13, kind: output, shape index: {1}]
  %14 = xla_tuple %s12, %s13
  %s15 = sld [smem:[#allocation0]]
  $region89: #{tpu_custom_call.1} parent=0
    _
  %s17 = ssub.s32 1, %s15
  %s18 = scalar_select 0, %s17, %s15
  $region1: #{tpu_custom_call.1} parent=0
    #allocation2 [shape = 'u8[16384]{0}', space=vmem, size = 0x4000, scoped, tag = 'output window, operand 0']
    #allocation3 [shape = 's32[2]{0}', space=sflag, size = 0x8, scoped, tag = 'scoped memory for tpu_custom_call.1']
    #allocation4 [shape = 'u8[16384]{0}', space=vmem, size = 0x4000, scoped, tag = 'output window, operand 1']
    #allocation5 [shape = 's32[2]{0}', space=sflag, size = 0x8, scoped, tag = 'scoped memory for tpu_custom_call.1']
    %19 = vsyncpa [#allocation3], 0
    %s20 = scalar_lea.sflag [#allocation3], 1
    %21 = vsyncpa %s20, 0
    %22 = vsyncpa [#allocation5], 0
    %s23 = scalar_lea.sflag [#allocation5], 1
    %24 = vsyncpa %s23, 0
    loop: start=0, step=1, limit=4
    $region2: #{tpu_custom_call.1} parent=1 // loop_pre_header
      _
    $region3: #{tpu_custom_call.1} parent=1 // loop_header
      %s26 = sphi 0, %s30
      %p27 = scmp.ge.s32.totalorder %s26, 4
      %s36 = sphi 0, %s38
      %s39 = sphi 0, %s36
      %s40 = sphi 0, %s39
      %s56 = sphi 0, %s40
      %s62 = sphi 0, %s64
      %s65 = sphi 0, %s62
      %s66 = sphi 0, %s65
      %s82 = sphi 0, %s66
      %s88 = sphi 0, %s90
      %s91 = sphi 0, %s88
      %s92 = sphi 0, %s91
      %s108 = sphi 0, %s92
      %s114 = sphi 0, %s116
      %s117 = sphi 0, %s114
      %s118 = sphi 0, %s117
      %s134 = sphi 0, %s118
      %s138 = sphi 0, %s138
      %s140 = sphi 0, %s138
      %s141 = sphi 0, %s140
      %s155 = sphi 0, %s141
      %s159 = sphi 0, %s159
      %s161 = sphi 0, %s159
      %s162 = sphi 0, %s161
      %s176 = sphi 0, %s162
      %s180 = sphi 0, %s180
      %s182 = sphi 0, %s180
      %s183 = sphi 0, %s182
      %s197 = sphi 0, %s183
      %s201 = sphi 0, %s201
      %s203 = sphi 0, %s201
      %s204 = sphi 0, %s203
      %s218 = sphi 0, %s204
      %s222 = sphi 0, %s222
      %s224 = sphi 0, %s222
      %s225 = sphi 0, %s224
      %s239 = sphi 0, %s225
      %s243 = sphi 0, %s243
      %s245 = sphi 0, %s243
      %s246 = sphi 0, %s245
      %s260 = sphi 0, %s246
      %s264 = sphi 0, %s264
      %s266 = sphi 0, %s264
      %s267 = sphi 0, %s266
      %s281 = sphi 0, %s267
      %s285 = sphi 0, %s285
      %s287 = sphi 0, %s285
      %s288 = sphi 0, %s287
      %s302 = sphi 0, %s288
      %s308 = sphi 0, %s310
      %s311 = sphi 0, %s308
      %s312 = sphi 0, %s311
      %s328 = sphi 0, %s312
      %s334 = sphi 0, %s336
      %s337 = sphi 0, %s334
      %s338 = sphi 0, %s337
      %s354 = sphi 0, %s338
    $region4: #{tpu_custom_call.1} parent=1 // loop_header_branch
      %29 = sbr.rel (%p27) target = $region8
    $region5: #{tpu_custom_call.1} parent=1 // loop_body
      %s31 = ssub.s32 %s26, 1
      %s32 = ssub.s32 %s26, 2
      %s33 = sadd.s32 %s26, 1
      %s34 = ssub.s32 %s26, %s33
      %p35 = scmp.eq.s32.totalorder %s34, 0
      %s37 = sadd.s32 %s36, 1
      %s38 = scalar_select %p35, %s36, %s37
      %p41 = pneg %p35
      %p42 = scmp.eq.s32.totalorder %s26, 1
      %p43 = por %p41, %p42
      %p44 = scmp.ne.s32.totalorder %s36, %s39
      %p45 = scmp.eq.s32.totalorder %s26, 0
      %p46 = por %p44, %p45
      %p47 = scmp.ne.s32.totalorder %s36, %s39
      %p48 = scmp.eq.s32.totalorder %s31, 1
      %p49 = por %p47, %p48
      %p50 = scmp.ne.s32.totalorder %s39, %s40
      %p51 = scmp.eq.s32.totalorder %s31, 0
      %p52 = por %p50, %p51
      %p53 = scmp.ne.s32.totalorder %s39, %s40
      %p54 = scmp.eq.s32.totalorder %s32, 1
      %p55 = por %p53, %p54
      %p57 = scmp.ne.s32.totalorder %s40, %s56
      %p58 = scmp.eq.s32.totalorder %s32, 0
      %p59 = por %p57, %p58
      %s60 = ssub.s32 %s26, %s33
      %p61 = scmp.eq.s32.totalorder %s60, 0
      %s63 = sadd.s32 %s62, 1
      %s64 = scalar_select %p61, %s62, %s63
      %p67 = pneg %p61
      %p68 = scmp.eq.s32.totalorder %s26, 1
      %p69 = por %p67, %p68
      %p70 = scmp.ne.s32.totalorder %s62, %s65
      %p71 = scmp.eq.s32.totalorder %s26, 0
      %p72 = por %p70, %p71
      %p73 = scmp.ne.s32.totalorder %s62, %s65
      %p74 = scmp.eq.s32.totalorder %s31, 1
      %p75 = por %p73, %p74
      %p76 = scmp.ne.s32.totalorder %s65, %s66
      %p77 = scmp.eq.s32.totalorder %s31, 0
      %p78 = por %p76, %p77
      %p79 = scmp.ne.s32.totalorder %s65, %s66
      %p80 = scmp.eq.s32.totalorder %s32, 1
      %p81 = por %p79, %p80
      %p83 = scmp.ne.s32.totalorder %s66, %s82
      %p84 = scmp.eq.s32.totalorder %s32, 0
      %p85 = por %p83, %p84
      %s86 = ssub.s32 %s26, %s33
      %p87 = scmp.eq.s32.totalorder %s86, 0
      %s89 = sadd.s32 %s88, 1
      %s90 = scalar_select %p87, %s88, %s89
      %p93 = pneg %p87
      %p94 = scmp.eq.s32.totalorder %s26, 1
      %p95 = por %p93, %p94
      %p96 = scmp.ne.s32.totalorder %s88, %s91
      %p97 = scmp.eq.s32.totalorder %s26, 0
      %p98 = por %p96, %p97
      %p99 = scmp.ne.s32.totalorder %s88, %s91
      %p100 = scmp.eq.s32.totalorder %s31, 1
      %p101 = por %p99, %p100
      %p102 = scmp.ne.s32.totalorder %s91, %s92
      %p103 = scmp.eq.s32.totalorder %s31, 0
      %p104 = por %p102, %p103
      %p105 = scmp.ne.s32.totalorder %s91, %s92
      %p106 = scmp.eq.s32.totalorder %s32, 1
      %p107 = por %p105, %p106
      %p109 = scmp.ne.s32.totalorder %s92, %s108
      %p110 = scmp.eq.s32.totalorder %s32, 0
      %p111 = por %p109, %p110
      %s112 = ssub.s32 %s26, %s33
      %p113 = scmp.eq.s32.totalorder %s112, 0
      %s115 = sadd.s32 %s114, 1
      %s116 = scalar_select %p113, %s114, %s115
      %p119 = pneg %p113
      %p120 = scmp.eq.s32.totalorder %s26, 1
      %p121 = por %p119, %p120
      %p122 = scmp.ne.s32.totalorder %s114, %s117
      %p123 = scmp.eq.s32.totalorder %s26, 0
      %p124 = por %p122, %p123
      %p125 = scmp.ne.s32.totalorder %s114, %s117
      %p126 = scmp.eq.s32.totalorder %s31, 1
      %p127 = por %p125, %p126
      %p128 = scmp.ne.s32.totalorder %s117, %s118
      %p129 = scmp.eq.s32.totalorder %s31, 0
      %p130 = por %p128, %p129
      %p131 = scmp.ne.s32.totalorder %s117, %s118
      %p132 = scmp.eq.s32.totalorder %s32, 1
      %p133 = por %p131, %p132
      %p135 = scmp.ne.s32.totalorder %s118, %s134
      %p136 = scmp.eq.s32.totalorder %s32, 0
      %p137 = por %p135, %p136
      %s139 = sadd.s32 %s138, 1
      %p142 = scmp.eq.s32.totalorder %s26, 1
      %p143 = scmp.ne.s32.totalorder %s138, %s140
      %p144 = scmp.eq.s32.totalorder %s26, 0
      %p145 = por %p143, %p144
      %p146 = scmp.ne.s32.totalorder %s138, %s140
      %p147 = scmp.eq.s32.totalorder %s31, 1
      %p148 = por %p146, %p147
      %p149 = scmp.ne.s32.totalorder %s140, %s141
      %p150 = scmp.eq.s32.totalorder %s31, 0
      %p151 = por %p149, %p150
      %p152 = scmp.ne.s32.totalorder %s140, %s141
      %p153 = scmp.eq.s32.totalorder %s32, 1
      %p154 = por %p152, %p153
      %p156 = scmp.ne.s32.totalorder %s141, %s155
      %p157 = scmp.eq.s32.totalorder %s32, 0
      %p158 = por %p156, %p157
      %s160 = sadd.s32 %s159, 1
      %p163 = scmp.eq.s32.totalorder %s26, 1
      %p164 = scmp.ne.s32.totalorder %s159, %s161
      %p165 = scmp.eq.s32.totalorder %s26, 0
      %p166 = por %p164, %p165
      %p167 = scmp.ne.s32.totalorder %s159, %s161
      %p168 = scmp.eq.s32.totalorder %s31, 1
      %p169 = por %p167, %p168
      %p170 = scmp.ne.s32.totalorder %s161, %s162
      %p171 = scmp.eq.s32.totalorder %s31, 0
      %p172 = por %p170, %p171
      %p173 = scmp.ne.s32.totalorder %s161, %s162
      %p174 = scmp.eq.s32.totalorder %s32, 1
      %p175 = por %p173, %p174
      %p177 = scmp.ne.s32.totalorder %s162, %s176
      %p178 = scmp.eq.s32.totalorder %s32, 0
      %p179 = por %p177, %p178
      %s181 = sadd.s32 %s180, 1
      %p184 = scmp.eq.s32.totalorder %s26, 1
      %p185 = scmp.ne.s32.totalorder %s180, %s182
      %p186 = scmp.eq.s32.totalorder %s26, 0
      %p187 = por %p185, %p186
      %p188 = scmp.ne.s32.totalorder %s180, %s182
      %p189 = scmp.eq.s32.totalorder %s31, 1
      %p190 = por %p188, %p189
      %p191 = scmp.ne.s32.totalorder %s182, %s183
      %p192 = scmp.eq.s32.totalorder %s31, 0
      %p193 = por %p191, %p192
      %p194 = scmp.ne.s32.totalorder %s182, %s183
      %p195 = scmp.eq.s32.totalorder %s32, 1
      %p196 = por %p194, %p195
      %p198 = scmp.ne.s32.totalorder %s183, %s197
      %p199 = scmp.eq.s32.totalorder %s32, 0
      %p200 = por %p198, %p199
      %s202 = sadd.s32 %s201, 1
      %p205 = scmp.eq.s32.totalorder %s26, 1
      %p206 = scmp.ne.s32.totalorder %s201, %s203
      %p207 = scmp.eq.s32.totalorder %s26, 0
      %p208 = por %p206, %p207
      %p209 = scmp.ne.s32.totalorder %s201, %s203
      %p210 = scmp.eq.s32.totalorder %s31, 1
      %p211 = por %p209, %p210
      %p212 = scmp.ne.s32.totalorder %s203, %s204
      %p213 = scmp.eq.s32.totalorder %s31, 0
      %p214 = por %p212, %p213
      %p215 = scmp.ne.s32.totalorder %s203, %s204
      %p216 = scmp.eq.s32.totalorder %s32, 1
      %p217 = por %p215, %p216
      %p219 = scmp.ne.s32.totalorder %s204, %s218
      %p220 = scmp.eq.s32.totalorder %s32, 0
      %p221 = por %p219, %p220
      %s223 = sadd.s32 %s222, 1
      %p226 = scmp.eq.s32.totalorder %s26, 1
      %p227 = scmp.ne.s32.totalorder %s222, %s224
      %p228 = scmp.eq.s32.totalorder %s26, 0
      %p229 = por %p227, %p228
      %p230 = scmp.ne.s32.totalorder %s222, %s224
      %p231 = scmp.eq.s32.totalorder %s31, 1
      %p232 = por %p230, %p231
      %p233 = scmp.ne.s32.totalorder %s224, %s225
      %p234 = scmp.eq.s32.totalorder %s31, 0
      %p235 = por %p233, %p234
      %p236 = scmp.ne.s32.totalorder %s224, %s225
      %p237 = scmp.eq.s32.totalorder %s32, 1
      %p238 = por %p236, %p237
      %p240 = scmp.ne.s32.totalorder %s225, %s239
      %p241 = scmp.eq.s32.totalorder %s32, 0
      %p242 = por %p240, %p241
      %s244 = sadd.s32 %s243, 1
      %p247 = scmp.eq.s32.totalorder %s26, 1
      %p248 = scmp.ne.s32.totalorder %s243, %s245
      %p249 = scmp.eq.s32.totalorder %s26, 0
      %p250 = por %p248, %p249
      %p251 = scmp.ne.s32.totalorder %s243, %s245
      %p252 = scmp.eq.s32.totalorder %s31, 1
      %p253 = por %p251, %p252
      %p254 = scmp.ne.s32.totalorder %s245, %s246
      %p255 = scmp.eq.s32.totalorder %s31, 0
      %p256 = por %p254, %p255
      %p257 = scmp.ne.s32.totalorder %s245, %s246
      %p258 = scmp.eq.s32.totalorder %s32, 1
      %p259 = por %p257, %p258
      %p261 = scmp.ne.s32.totalorder %s246, %s260
      %p262 = scmp.eq.s32.totalorder %s32, 0
      %p263 = por %p261, %p262
      %s265 = sadd.s32 %s264, 1
      %p268 = scmp.eq.s32.totalorder %s26, 1
      %p269 = scmp.ne.s32.totalorder %s264, %s266
      %p270 = scmp.eq.s32.totalorder %s26, 0
      %p271 = por %p269, %p270
      %p272 = scmp.ne.s32.totalorder %s264, %s266
      %p273 = scmp.eq.s32.totalorder %s31, 1
      %p274 = por %p272, %p273
      %p275 = scmp.ne.s32.totalorder %s266, %s267
      %p276 = scmp.eq.s32.totalorder %s31, 0
      %p277 = por %p275, %p276
      %p278 = scmp.ne.s32.totalorder %s266, %s267
      %p279 = scmp.eq.s32.totalorder %s32, 1
      %p280 = por %p278, %p279
      %p282 = scmp.ne.s32.totalorder %s267, %s281
      %p283 = scmp.eq.s32.totalorder %s32, 0
      %p284 = por %p282, %p283
      %s286 = sadd.s32 %s285, 1
      %p289 = scmp.eq.s32.totalorder %s26, 1
      %p290 = scmp.ne.s32.totalorder %s285, %s287
      %p291 = scmp.eq.s32.totalorder %s26, 0
      %p292 = por %p290, %p291
      %p293 = scmp.ne.s32.totalorder %s285, %s287
      %p294 = scmp.eq.s32.totalorder %s31, 1
      %p295 = por %p293, %p294
      %p296 = scmp.ne.s32.totalorder %s287, %s288
      %p297 = scmp.eq.s32.totalorder %s31, 0
      %p298 = por %p296, %p297
      %p299 = scmp.ne.s32.totalorder %s287, %s288
      %p300 = scmp.eq.s32.totalorder %s32, 1
      %p301 = por %p299, %p300
      %p303 = scmp.ne.s32.totalorder %s288, %s302
      %p304 = scmp.eq.s32.totalorder %s32, 0
      %p305 = por %p303, %p304
      %s306 = ssub.s32 %s26, %s33
      %p307 = scmp.eq.s32.totalorder %s306, 0
      %s309 = sadd.s32 %s308, 1
      %s310 = scalar_select %p307, %s308, %s309
      %p313 = pneg %p307
      %p314 = scmp.eq.s32.totalorder %s26, 1
      %p315 = por %p313, %p314
      %p316 = scmp.ne.s32.totalorder %s308, %s311
      %p317 = scmp.eq.s32.totalorder %s26, 0
      %p318 = por %p316, %p317
      %p319 = scmp.ne.s32.totalorder %s308, %s311
      %p320 = scmp.eq.s32.totalorder %s31, 1
      %p321 = por %p319, %p320
      %p322 = scmp.ne.s32.totalorder %s311, %s312
      %p323 = scmp.eq.s32.totalorder %s31, 0
      %p324 = por %p322, %p323
      %p325 = scmp.ne.s32.totalorder %s311, %s312
      %p326 = scmp.eq.s32.totalorder %s32, 1
      %p327 = por %p325, %p326
      %p329 = scmp.ne.s32.totalorder %s312, %s328
      %p330 = scmp.eq.s32.totalorder %s32, 0
      %p331 = por %p329, %p330
      %s332 = ssub.s32 %s26, %s33
      %p333 = scmp.eq.s32.totalorder %s332, 0
      %s335 = sadd.s32 %s334, 1
      %s336 = scalar_select %p333, %s334, %s335
      %p339 = pneg %p333
      %p340 = scmp.eq.s32.totalorder %s26, 1
      %p341 = por %p339, %p340
      %p342 = scmp.ne.s32.totalorder %s334, %s337
      %p343 = scmp.eq.s32.totalorder %s26, 0
      %p344 = por %p342, %p343
      %p345 = scmp.ne.s32.totalorder %s334, %s337
      %p346 = scmp.eq.s32.totalorder %s31, 1
      %p347 = por %p345, %p346
      %p348 = scmp.ne.s32.totalorder %s337, %s338
      %p349 = scmp.eq.s32.totalorder %s31, 0
      %p350 = por %p348, %p349
      %p351 = scmp.ne.s32.totalorder %s337, %s338
      %p352 = scmp.eq.s32.totalorder %s32, 1
      %p353 = por %p351, %p352
      %p355 = scmp.ne.s32.totalorder %s338, %s354
      %p356 = scmp.eq.s32.totalorder %s32, 0
      %p357 = por %p355, %p356
      %p358 = scmp.le.s32.totalorder 1, %s26
      %p359 = scmp.lt.s32.totalorder %s26, 3
      %p360 = pnand %p358, %p359
      %p361 = pneg %p360
      // Predicated region
      $region9: #{tpu_custom_call.1} parent=5 // pred_check
        _
      $region10: #{tpu_custom_call.1} parent=5 // pred_check_branch
        %363 = sbr.rel (%p360) target = $region12
      $region11: #{tpu_custom_call.1} parent=5 // pred_region
        %s364 = ssub.s32 %s26, 1
        // Predicated region
        $region13: #{tpu_custom_call.1} parent=11 // pred_check
          %p365 = pneg %p151
        $region14: #{tpu_custom_call.1} parent=11 // pred_check_branch
          %367 = sbr.rel (%p365) target = $region16
        $region15: #{tpu_custom_call.1} parent=11 // pred_region
          _
        $region16: #{tpu_custom_call.1} parent=11 // pred_fallthru
          _
        // Predicated region
        $region17: #{tpu_custom_call.1} parent=11 // pred_check
          %p368 = pneg %p172
        $region18: #{tpu_custom_call.1} parent=11 // pred_check_branch
          %370 = sbr.rel (%p368) target = $region20
        $region19: #{tpu_custom_call.1} parent=11 // pred_region
          _
        $region20: #{tpu_custom_call.1} parent=11 // pred_fallthru
          _
        // Predicated region
        $region21: #{tpu_custom_call.1} parent=11 // pred_check
          %p371 = pneg %p193
        $region22: #{tpu_custom_call.1} parent=11 // pred_check_branch
          %373 = sbr.rel (%p371) target = $region24
        $region23: #{tpu_custom_call.1} parent=11 // pred_region
          _
        $region24: #{tpu_custom_call.1} parent=11 // pred_fallthru
          _
        // Predicated region
        $region25: #{tpu_custom_call.1} parent=11 // pred_check
          %p374 = pneg %p214
        $region26: #{tpu_custom_call.1} parent=11 // pred_check_branch
          %376 = sbr.rel (%p374) target = $region28
        $region27: #{tpu_custom_call.1} parent=11 // pred_region
          _
        $region28: #{tpu_custom_call.1} parent=11 // pred_fallthru
          _
        // Predicated region
        $region29: #{tpu_custom_call.1} parent=11 // pred_check
          %p377 = pneg %p235
        $region30: #{tpu_custom_call.1} parent=11 // pred_check_branch
          %379 = sbr.rel (%p377) target = $region32
        $region31: #{tpu_custom_call.1} parent=11 // pred_region
          _
        $region32: #{tpu_custom_call.1} parent=11 // pred_fallthru
          _
        // Predicated region
        $region33: #{tpu_custom_call.1} parent=11 // pred_check
          %p380 = pneg %p256
        $region34: #{tpu_custom_call.1} parent=11 // pred_check_branch
          %382 = sbr.rel (%p380) target = $region36
        $region35: #{tpu_custom_call.1} parent=11 // pred_region
          _
        $region36: #{tpu_custom_call.1} parent=11 // pred_fallthru
          _
        // Predicated region
        $region37: #{tpu_custom_call.1} parent=11 // pred_check
          %p383 = pneg %p277
        $region38: #{tpu_custom_call.1} parent=11 // pred_check_branch
          %385 = sbr.rel (%p383) target = $region40
        $region39: #{tpu_custom_call.1} parent=11 // pred_region
          _
        $region40: #{tpu_custom_call.1} parent=11 // pred_fallthru
          _
        // Predicated region
        $region41: #{tpu_custom_call.1} parent=11 // pred_check
          %p386 = pneg %p298
        $region42: #{tpu_custom_call.1} parent=11 // pred_check_branch
          %388 = sbr.rel (%p386) target = $region44
        $region43: #{tpu_custom_call.1} parent=11 // pred_region
          _
        $region44: #{tpu_custom_call.1} parent=11 // pred_fallthru
          _
      $region12: #{tpu_custom_call.1} parent=5 // pred_fallthru
        _
      %p389 = scmp.lt.s32.totalorder %s26, 2
      // Predicated region
      $region45: #{tpu_custom_call.1} parent=5 // pred_check
        %p390 = pneg %p389
      $region46: #{tpu_custom_call.1} parent=5 // pred_check_branch
        %392 = sbr.rel (%p390) target = $region48
      $region47: #{tpu_custom_call.1} parent=5 // pred_region
        // Predicated region
        $region49: #{tpu_custom_call.1} parent=47 // pred_check
          %p393 = pneg %p46
        $region50: #{tpu_custom_call.1} parent=47 // pred_check_branch
          %395 = sbr.rel (%p393) target = $region52
        $region51: #{tpu_custom_call.1} parent=47 // pred_region
          %p396 = scmp.lt.s32.totalorder %s26, 1
          %s397 = scalar_select %p396, %s26, 1
          %s398 = smul.addr %s397, 2
          %s399 = smul.addr %s398, 8
          %s400 = scalar_lea.vmem %s0, %s399
        $region52: #{tpu_custom_call.1} parent=47 // pred_fallthru
          _
        // Predicated region
        $region53: #{tpu_custom_call.1} parent=47 // pred_check
          %p401 = pneg %p72
        $region54: #{tpu_custom_call.1} parent=47 // pred_check_branch
          %403 = sbr.rel (%p401) target = $region56
        $region55: #{tpu_custom_call.1} parent=47 // pred_region
          %p404 = scmp.lt.s32.totalorder %s26, 1
          %s405 = scalar_select %p404, %s26, 1
          %s406 = smul.addr %s405, 2
          %s407 = smul.addr %s406, 8
          %s408 = scalar_lea.vmem %s1, %s407
        $region56: #{tpu_custom_call.1} parent=47 // pred_fallthru
          _
        // Predicated region
        $region57: #{tpu_custom_call.1} parent=47 // pred_check
          %p409 = pneg %p98
        $region58: #{tpu_custom_call.1} parent=47 // pred_check_branch
          %411 = sbr.rel (%p409) target = $region60
        $region59: #{tpu_custom_call.1} parent=47 // pred_region
          %p412 = scmp.lt.s32.totalorder %s26, 1
          %s413 = scalar_select %p412, %s26, 1
          %s414 = smul.addr %s413, 8
          %s415 = scalar_lea.vmem %s2, %s414
        $region60: #{tpu_custom_call.1} parent=47 // pred_fallthru
          _
        // Predicated region
        $region61: #{tpu_custom_call.1} parent=47 // pred_check
          %p416 = pneg %p124
        $region62: #{tpu_custom_call.1} parent=47 // pred_check_branch
          %418 = sbr.rel (%p416) target = $region64
        $region63: #{tpu_custom_call.1} parent=47 // pred_region
          %p419 = scmp.lt.s32.totalorder %s26, 1
          %s420 = scalar_select %p419, %s26, 1
          %s421 = smul.addr %s420, 8
          %s422 = scalar_lea.vmem %s3, %s421
        $region64: #{tpu_custom_call.1} parent=47 // pred_fallthru
          _
      $region48: #{tpu_custom_call.1} parent=5 // pred_fallthru
        _
      %p423 = scmp.le.s32.totalorder 1, %s26
      %p424 = scmp.lt.s32.totalorder %s26, 3
      %p425 = pnand %p423, %p424
      %p426 = pneg %p425
      // Predicated region
      $region65: #{tpu_custom_call.1} parent=5 // pred_check
        _
      $region66: #{tpu_custom_call.1} parent=5 // pred_check_branch
        %428 = sbr.rel (%p425) target = $region68
      $region67: #{tpu_custom_call.1} parent=5 // pred_region
        %s429 = ssub.s32 %s26, 1
        %p430 = scmp.lt.s32.totalorder %s31, 1
        %s431 = scalar_select %p430, %s31, 1
        %s432 = smul.addr %s431, 2
        %s433 = smul.addr %s432, 8
        %s434 = scalar_lea.vmem %s0, %s433
        %p435 = pneg %p52
        %p436 = pneg %p49
        %p437 = scmp.lt.s32.totalorder %s31, 1
        %s438 = scalar_select %p437, %s31, 1
        %s439 = smul.addr %s438, 2
        %s440 = smul.addr %s439, 8
        %s441 = scalar_lea.vmem %s1, %s440
        %p442 = pneg %p78
        %p443 = pneg %p75
        %p444 = scmp.lt.s32.totalorder %s31, 1
        %s445 = scalar_select %p444, %s31, 1
        %s446 = smul.addr %s445, 8
        %s447 = scalar_lea.vmem %s2, %s446
        %p448 = pneg %p104
        %p449 = pneg %p101
        %p450 = scmp.lt.s32.totalorder %s31, 1
        %s451 = scalar_select %p450, %s31, 1
        %s452 = smul.addr %s451, 8
        %s453 = scalar_lea.vmem %s3, %s452
        %p454 = pneg %p130
        %p455 = pneg %p127
        %p456 = pneg %p151
        %p457 = pneg %p148
        %p458 = pneg %p172
        %p459 = pneg %p169
        %p460 = pneg %p193
        %p461 = pneg %p190
        %p462 = pneg %p214
        %p463 = pneg %p211
        %p464 = pneg %p235
        %p465 = pneg %p232
        %p466 = pneg %p256
        %p467 = pneg %p253
        %p468 = pneg %p277
        %p469 = pneg %p274
        %p470 = pneg %p298
        %p471 = pneg %p295
        %p472 = pneg %p324
        %p473 = pneg %p321
        %s474 = sand.u32 %s311, 1
        %s475 = scalar_lea.sflag [#allocation3], %s474
        %s476 = sand.u32 %s311, 1
        %s477 = smul.addr %s476, 16
        %s478 = scalar_lea.vmem [#allocation2], %s477
        %p479 = pneg %p350
        %p480 = pneg %p347
        %s481 = sand.u32 %s337, 1
        %s482 = scalar_lea.sflag [#allocation5], %s481
        %s483 = sand.u32 %s337, 1
        %s484 = smul.addr %s483, 16
        %s485 = scalar_lea.vmem [#allocation4], %s484
        %p486 = scmp.lt.s32.totalorder %s31, 1
        %s487 = scalar_select %p486, %s31, 1
        %s488 = smul.addr %s487, 2
        %s489 = smul.addr %s488, 8
        %s490 = scalar_lea.vmem %s0, %s489
        %p491 = scmp.lt.s32.totalorder %s31, 1
        %s492 = scalar_select %p491, %s31, 1
        %s493 = smul.addr %s492, 2
        %s494 = smul.addr %s493, 8
        %s495 = scalar_lea.vmem %s1, %s494
        %p496 = scmp.lt.s32.totalorder %s31, 1
        %s497 = scalar_select %p496, %s31, 1
        %s498 = smul.addr %s497, 8
        %s499 = scalar_lea.vmem %s2, %s498
        %p500 = scmp.lt.s32.totalorder %s31, 1
        %s501 = scalar_select %p500, %s31, 1
        %s502 = smul.addr %s501, 8
        %s503 = scalar_lea.vmem %s3, %s502
        %v505 = vld [vmem:[%s490] sm:$0xff]
        %v506 = vld [vmem:[%s490 + $0x8] sm:$0xff]
        %v507 = vld [vmem:[%s495] sm:$0xff]
        %v508 = vld [vmem:[%s495 + $0x8] sm:$0xff]
        %v509 = vld [vmem:[%s499] sm:$0x3f]
        %v510 = vld [vmem:[%s503] sm:$0x3f]
        %vm511 = vcmask 523264
        %v512 = vsel %vm511, %v505, 0.0
        %513 = vadd.xlane.f32.xlu0 %v512
        %v514 = vpop.xlane.xlu0 %513
        %v515 = vsel %vm511, %v506, 0.0
        %516 = vadd.xlane.f32.xlu0 %v515
        %v517 = vpop.xlane.xlu0 %516
        %v518 = vrcp.pop 64.0
        %v519 = vmul.f32 64.0, %v518
        %v520 = vsub.f32 1.0, %v519
        %v521 = vmul.f32 %v518, %v520
        %v522 = vadd.f32 %v518, %v521
        %vm523 = vweird.f32 %v518
        %v524 = vsel %vm523, %v518, %v522
        %v525 = vmul.f32 %v514, %v524
        %v526 = vmul.f32 %v517, %v524
        %v527 = vsub.f32 %v505, %v525
        %v528 = vsub.f32 %v506, %v526
        %v529 = vmul.f32 %v527, %v527
        %v530 = vmul.f32 %v528, %v528
        %v531 = vsel %vm511, %v529, 0.0
        %532 = vadd.xlane.f32.xlu0 %v531
        %v533 = vpop.xlane.xlu0 %532
        %v534 = vsel %vm511, %v530, 0.0
        %535 = vadd.xlane.f32.xlu0 %v534
        %v536 = vpop.xlane.xlu0 %535
        %v537 = vmul.f32 %v533, %v524
        %v538 = vmul.f32 %v536, %v524
        %v539 = vadd.f32 %v537, 1e-06
        %v540 = vadd.f32 %v538, 1e-06
        %v541 = vrsqrt.pop %v539
        %v542 = vmul.f32 %v541, %v539
        %v543 = vmul.f32 %v542, %v541
        %v544 = vmul.f32 0.5, %v543
        %v545 = vsub.f32 1.5, %v544
        %v546 = vmul.f32 %v541, %v545
        %vm547 = vweird.f32 %v539
        %vm548 = vweird.f32 %v541
        %vm549 = vmor %vm547, %vm548
        %v550 = vsel %vm549, %v541, %v546
        %v551 = vrsqrt.pop %v540
        %v552 = vmul.f32 %v551, %v540
        %v553 = vmul.f32 %v552, %v551
        %v554 = vmul.f32 0.5, %v553
        %v555 = vsub.f32 1.5, %v554
        %v556 = vmul.f32 %v551, %v555
        %vm557 = vweird.f32 %v540
        %vm558 = vweird.f32 %v551
        %vm559 = vmor %vm557, %vm558
        %v560 = vsel %vm559, %v551, %v556
        %v561 = vmul.f32 %v527, %v550
        %v562 = vmul.f32 %v528, %v560
        %v563 = vadd.f32 %v509, 1.0
        %v564 = vperm.slane %v563, 1
        %v565 = vmul.f32 %v561, %v564
        %v566 = vmul.f32 %v562, %v564
        %v567 = vperm.slane %v509, 0
        %v568 = vadd.f32 %v565, %v567
        %v569 = vadd.f32 %v566, %v567
        %v570 = vsel %vm511, %v507, 0.0
        %571 = vadd.xlane.f32.xlu0 %v570
        %v572 = vpop.xlane.xlu0 %571
        %v573 = vsel %vm511, %v508, 0.0
        %574 = vadd.xlane.f32.xlu0 %v573
        %v575 = vpop.xlane.xlu0 %574
        %v576 = vmul.f32 %v572, %v524
        %v577 = vmul.f32 %v575, %v524
        %v578 = vsub.f32 %v507, %v576
        %v579 = vsub.f32 %v508, %v577
        %v580 = vmul.f32 %v578, %v578
        %v581 = vmul.f32 %v579, %v579
        %v582 = vsel %vm511, %v580, 0.0
        %583 = vadd.xlane.f32.xlu0 %v582
        %v584 = vpop.xlane.xlu0 %583
        %v585 = vsel %vm511, %v581, 0.0
        %586 = vadd.xlane.f32.xlu0 %v585
        %v587 = vpop.xlane.xlu0 %586
        %v588 = vmul.f32 %v584, %v524
        %v589 = vmul.f32 %v587, %v524
        %v590 = vadd.f32 %v588, 1e-06
        %v591 = vadd.f32 %v589, 1e-06
        %v592 = vrsqrt.pop %v590
        %v593 = vmul.f32 %v592, %v590
        %v594 = vmul.f32 %v593, %v592
        %v595 = vmul.f32 0.5, %v594
        %v596 = vsub.f32 1.5, %v595
        %v597 = vmul.f32 %v592, %v596
        %vm598 = vweird.f32 %v590
        %vm599 = vweird.f32 %v592
        %vm600 = vmor %vm598, %vm599
        %v601 = vsel %vm600, %v592, %v597
        %v602 = vrsqrt.pop %v591
        %v603 = vmul.f32 %v602, %v591
        %v604 = vmul.f32 %v603, %v602
        %v605 = vmul.f32 0.5, %v604
        %v606 = vsub.f32 1.5, %v605
        %v607 = vmul.f32 %v602, %v606
        %vm608 = vweird.f32 %v591
        %vm609 = vweird.f32 %v602
        %vm610 = vmor %vm608, %vm609
        %v611 = vsel %vm610, %v602, %v607
        %v612 = vmul.f32 %v578, %v601
        %v613 = vmul.f32 %v579, %v611
        %v614 = vadd.f32 %v510, 1.0
        %v615 = vperm.slane %v614, 1
        %v616 = vmul.f32 %v612, %v615
        %v617 = vmul.f32 %v613, %v615
        %v618 = vperm.slane %v510, 0
        %v619 = vadd.f32 %v616, %v618
        %v620 = vadd.f32 %v617, %v618
        %v621 = vpack.c.bf16 %v569, %v568
        %v622 = vld [vmem:[%s4] sm:$0xff]
        %v623 = vld [vmem:[%s4 + $0x8] sm:$0xff]
        %v624 = vld [vmem:[%s4 + $0x10] sm:$0xff]
        %v625 = vld [vmem:[%s4 + $0x18] sm:$0xff]
        %v626 = vld [vmem:[%s4 + $0x20] sm:$0xff]
        %v627 = vld [vmem:[%s4 + $0x28] sm:$0xff]
        %v628 = vld [vmem:[%s4 + $0x30] sm:$0xff]
        %v629 = vld [vmem:[%s4 + $0x38] sm:$0xff]
        %v630 = vld [vmem:[%s5] ss:$2 sm:$0x3]
        %v632 = vperm.slane %v630, 0
        %v633 = vperm.slane %v630, 1
        %v644 = vunpack.c.l.b16 %v622
        %v645 = vunpack.c.h.b16 %v622
        %v646 = vunpack.c.l.b16 %v623
        %v647 = vunpack.c.h.b16 %v623
        %v648 = vunpack.c.l.b16 %v624
        %v649 = vunpack.c.h.b16 %v624
        %v650 = vunpack.c.l.b16 %v625
        %v651 = vunpack.c.h.b16 %v625
        %v652 = vunpack.c.l.b16 %v626
        %v653 = vunpack.c.h.b16 %v626
        %v654 = vunpack.c.l.b16 %v627
        %v655 = vunpack.c.h.b16 %v627
        %v656 = vunpack.c.l.b16 %v628
        %v657 = vunpack.c.h.b16 %v628
        %v658 = vunpack.c.l.b16 %v629
        %v659 = vunpack.c.h.b16 %v629
        %v660 = vpack.c.b16 %v646, %v644
        %v661 = vpack.c.b16 %v647, %v645
        %v662 = vpack.c.b16 %v650, %v648
        %v663 = vpack.c.b16 %v651, %v649
        %v664 = vpack.c.b16 %v654, %v652
        %v665 = vpack.c.b16 %v655, %v653
        %v666 = vpack.c.b16 %v658, %v656
        %v667 = vpack.c.b16 %v659, %v657
        %v677 = vsel %vm511, %v621, 0
        %679 = vmatpush.bf16.msra.mxu0 0
        %680 = vmatpush.bf16.msra.mxu0 0
        %681 = vmatpush.bf16.msra.mxu0 0
        %682 = vmatpush.bf16.msra.mxu0 0
        %683 = vmatpush.bf16.msra.mxu0 %v666
        %684 = vmatpush.bf16.msra.mxu0 %v664
        %685 = vmatpush.bf16.msra.mxu0 %v662
        %686 = vmatpush.bf16.msra.mxu0 %v660
        %687 = vmatmul.bf16.gmra.mxu0 %v677
        %v688 = vpop.f32.mrf.mxu0
        %v689 = vadd.f32 %v632, %v688
        %v690 = vpop.f32.mrf.mxu0
        %v691 = vadd.f32 %v632, %v690
        %692 = vdwg.mxu0
        %693 = vmatpush.bf16.msra.mxu0 0
        %694 = vmatpush.bf16.msra.mxu0 0
        %695 = vmatpush.bf16.msra.mxu0 0
        %696 = vmatpush.bf16.msra.mxu0 0
        %697 = vmatpush.bf16.msra.mxu0 %v667
        %698 = vmatpush.bf16.msra.mxu0 %v665
        %699 = vmatpush.bf16.msra.mxu0 %v663
        %700 = vmatpush.bf16.msra.mxu0 %v661
        %701 = vmatmul.bf16.gmra.mxu0 %v677
        %v702 = vpop.f32.mrf.mxu0
        %v703 = vadd.f32 %v633, %v702
        %v704 = vpop.f32.mrf.mxu0
        %v705 = vadd.f32 %v633, %v704
        %706 = vdwg.mxu0
        %v707 = vpack.c.bf16 %v620, %v619
        %s708 = scalar_lea.vmem %s4, 64
        %v709 = vld [vmem:[%s708] sm:$0xff]
        %v710 = vld [vmem:[%s708 + $0x8] sm:$0xff]
        %v711 = vld [vmem:[%s708 + $0x10] sm:$0xff]
        %v712 = vld [vmem:[%s708 + $0x18] sm:$0xff]
        %v713 = vld [vmem:[%s708 + $0x20] sm:$0xff]
        %v714 = vld [vmem:[%s708 + $0x28] sm:$0xff]
        %v715 = vld [vmem:[%s708 + $0x30] sm:$0xff]
        %v716 = vld [vmem:[%s708 + $0x38] sm:$0xff]
        %s717 = scalar_lea.vmem %s5, 1
        %v718 = vld [vmem:[%s717] ss:$2 sm:$0x3]
        %v720 = vperm.slane %v718, 0
        %v721 = vperm.slane %v718, 1
        %v732 = vunpack.c.l.b16 %v709
        %v733 = vunpack.c.h.b16 %v709
        %v734 = vunpack.c.l.b16 %v710
        %v735 = vunpack.c.h.b16 %v710
        %v736 = vunpack.c.l.b16 %v711
        %v737 = vunpack.c.h.b16 %v711
        %v738 = vunpack.c.l.b16 %v712
        %v739 = vunpack.c.h.b16 %v712
        %v740 = vunpack.c.l.b16 %v713
        %v741 = vunpack.c.h.b16 %v713
        %v742 = vunpack.c.l.b16 %v714
        %v743 = vunpack.c.h.b16 %v714
        %v744 = vunpack.c.l.b16 %v715
        %v745 = vunpack.c.h.b16 %v715
        %v746 = vunpack.c.l.b16 %v716
        %v747 = vunpack.c.h.b16 %v716
        %v748 = vpack.c.b16 %v734, %v732
        %v749 = vpack.c.b16 %v735, %v733
        %v750 = vpack.c.b16 %v738, %v736
        %v751 = vpack.c.b16 %v739, %v737
        %v752 = vpack.c.b16 %v742, %v740
        %v753 = vpack.c.b16 %v743, %v741
        %v754 = vpack.c.b16 %v746, %v744
        %v755 = vpack.c.b16 %v747, %v745
        %v765 = vsel %vm511, %v707, 0
        %767 = vmatpush.bf16.msra.mxu0 0
        %768 = vmatpush.bf16.msra.mxu0 0
        %769 = vmatpush.bf16.msra.mxu0 0
        %770 = vmatpush.bf16.msra.mxu0 0
        %771 = vmatpush.bf16.msra.mxu0 %v754
        %772 = vmatpush.bf16.msra.mxu0 %v752
        %773 = vmatpush.bf16.msra.mxu0 %v750
        %774 = vmatpush.bf16.msra.mxu0 %v748
        %775 = vmatmul.bf16.gmra.mxu0 %v765
        %v776 = vpop.f32.mrf.mxu0
        %v777 = vadd.f32 %v720, %v776
        %v778 = vpop.f32.mrf.mxu0
        %v779 = vadd.f32 %v720, %v778
        %780 = vdwg.mxu0
        %781 = vmatpush.bf16.msra.mxu0 0
        %782 = vmatpush.bf16.msra.mxu0 0
        %783 = vmatpush.bf16.msra.mxu0 0
        %784 = vmatpush.bf16.msra.mxu0 0
        %785 = vmatpush.bf16.msra.mxu0 %v755
        %786 = vmatpush.bf16.msra.mxu0 %v753
        %787 = vmatpush.bf16.msra.mxu0 %v751
        %788 = vmatpush.bf16.msra.mxu0 %v749
        %789 = vmatmul.bf16.gmra.mxu0 %v765
        %v790 = vpop.f32.mrf.mxu0
        %v791 = vadd.f32 %v721, %v790
        %v792 = vpop.f32.mrf.mxu0
        %v793 = vadd.f32 %v721, %v792
        %794 = vdwg.mxu0
        %v795 = vpack.c.bf16 %v689, %v689
        %v796 = vpack.c.bf16 %v691, %v691
        %v797 = vpack.c.bf16 %v777, %v777
        %v798 = vpack.c.bf16 %v779, %v779
        %v799 = vpack.c.bf16 %v703, %v703
        %v800 = vpack.c.bf16 %v705, %v705
        %v801 = vpack.c.bf16 %v791, %v791
        %v802 = vpack.c.bf16 %v793, %v793
        %v807 = vunpack.c.l.b16 %v795
        %v808 = vunpack.c.l.b16 %v796
        %v809 = vunpack.c.l.b16 %v797
        %v810 = vunpack.c.l.b16 %v798
        %v811 = vpack.c.b16 %v808, %v807
        %v812 = vpack.c.b16 %v810, %v809
        %813 = vrot.lane.b32.xlu0 %v811, 64
        %v814 = vpop.permute.xlu0 %813
        %815 = vrot.lane.b32.xlu0 %v812, 64
        %v816 = vpop.permute.xlu0 %815
        %vm817 = vcmask 261120
        %v819 = vsel %vm817, %v811, 0
        %v822 = vsel %vm817, %v812, 0
        %v825 = vsel %vm817, %v814, 0
        %v828 = vsel %vm817, %v816, 0
        %830 = vmatpush.bf16.xpose.msra.mxu0 0
        %831 = vmatpush.bf16.xpose.msra.mxu0 0
        %832 = vmatpush.bf16.xpose.msra.mxu0 0
        %833 = vmatpush.bf16.xpose.msra.mxu0 0
        %834 = vmatpush.bf16.xpose.msra.mxu0 0
        %835 = vmatpush.bf16.xpose.msra.mxu0 0
        %836 = vmatpush.bf16.xpose.msra.mxu0 %v828
        %837 = vmatpush.bf16.xpose.msra.mxu0 %v825
        %838 = vmatmul.bf16.gmra.mxu0 %v819
        %v839 = vpop.f32.mrf.mxu0
        %v840 = vadd.f32 0.0, %v839
        %v841 = vpop.f32.mrf.mxu0
        %v842 = vadd.f32 0.0, %v841
        %843 = vmatmul.bf16.gmra.mxu0 %v822
        %v844 = vpop.f32.mrf.mxu0
        %v845 = vadd.f32 0.0, %v844
        %v846 = vpop.f32.mrf.mxu0
        %v847 = vadd.f32 0.0, %v846
        %848 = vdwg.mxu0
        %v849 = vmul.f32 %v840, 0.17677669
        %v850 = vmul.f32 %v842, 0.17677669
        %v851 = vmul.f32 %v845, 0.17677669
        %v852 = vmul.f32 %v847, 0.17677669
        %v853 = vsel %vm817, %v849, -inf
        %854 = vmax.xlane.f32.xlu0 %v853
        %v855 = vpop.xlane.xlu0 %854
        %v856 = vsel %vm817, %v850, -inf
        %857 = vmax.xlane.f32.xlu0 %v856
        %v858 = vpop.xlane.xlu0 %857
        %v859 = vsel %vm817, %v851, -inf
        %860 = vmax.xlane.f32.xlu0 %v859
        %v861 = vpop.xlane.xlu0 %860
        %v862 = vsel %vm817, %v852, -inf
        %863 = vmax.xlane.f32.xlu0 %v862
        %v864 = vpop.xlane.xlu0 %863
        %v865 = vsub.f32 %v849, %v855
        %v866 = vsub.f32 %v850, %v858
        %v867 = vsub.f32 %v851, %v861
        %v868 = vsub.f32 %v852, %v864
        %v869 = vmul.f32 %v865, 1.442695
        %v870 = vpow.pop %v869
        %v871 = vmul.f32 %v866, 1.442695
        %v872 = vpow.pop %v871
        %v873 = vmul.f32 %v867, 1.442695
        %v874 = vpow.pop %v873
        %v875 = vmul.f32 %v868, 1.442695
        %v876 = vpow.pop %v875
        %v877 = vsel %vm817, %v870, 0.0
        %878 = vadd.xlane.f32.xlu0 %v877
        %v879 = vpop.xlane.xlu0 %878
        %v880 = vsel %vm817, %v872, 0.0
        %881 = vadd.xlane.f32.xlu0 %v880
        %v882 = vpop.xlane.xlu0 %881
        %v883 = vsel %vm817, %v874, 0.0
        %884 = vadd.xlane.f32.xlu0 %v883
        %v885 = vpop.xlane.xlu0 %884
        %v886 = vsel %vm817, %v876, 0.0
        %887 = vadd.xlane.f32.xlu0 %v886
        %v888 = vpop.xlane.xlu0 %887
        %v889 = vrcp.pop %v879
        %v890 = vmul.f32 %v879, %v889
        %v891 = vsub.f32 1.0, %v890
        %v892 = vmul.f32 %v889, %v891
        %v893 = vadd.f32 %v889, %v892
        %vm894 = vweird.f32 %v879
        %vm895 = vweird.f32 %v889
        %vm896 = vmor %vm894, %vm895
        %v897 = vsel %vm896, %v889, %v893
        %v898 = vand.u32 2147483647, %v879
        %vm899 = vcmp.eq.f32.partialorder %v898, 8.507059e+37
        %v900 = vand.u32 %v879, 2147483648
        %v901 = vor.u32 1.1754944e-38, %v900
        %v902 = vsel %vm899, %v901, %v897
        %v903 = vmul.f32 %v870, %v902
        %v904 = vrcp.pop %v882
        %v905 = vmul.f32 %v882, %v904
        %v906 = vsub.f32 1.0, %v905
        %v907 = vmul.f32 %v904, %v906
        %v908 = vadd.f32 %v904, %v907
        %vm909 = vweird.f32 %v882
        %vm910 = vweird.f32 %v904
        %vm911 = vmor %vm909, %vm910
        %v912 = vsel %vm911, %v904, %v908
        %v913 = vand.u32 2147483647, %v882
        %vm914 = vcmp.eq.f32.partialorder %v913, 8.507059e+37
        %v915 = vand.u32 %v882, 2147483648
        %v916 = vor.u32 1.1754944e-38, %v915
        %v917 = vsel %vm914, %v916, %v912
        %v918 = vmul.f32 %v872, %v917
        %v919 = vrcp.pop %v885
        %v920 = vmul.f32 %v885, %v919
        %v921 = vsub.f32 1.0, %v920
        %v922 = vmul.f32 %v919, %v921
        %v923 = vadd.f32 %v919, %v922
        %vm924 = vweird.f32 %v885
        %vm925 = vweird.f32 %v919
        %vm926 = vmor %vm924, %vm925
        %v927 = vsel %vm926, %v919, %v923
        %v928 = vand.u32 2147483647, %v885
        %vm929 = vcmp.eq.f32.partialorder %v928, 8.507059e+37
        %v930 = vand.u32 %v885, 2147483648
        %v931 = vor.u32 1.1754944e-38, %v930
        %v932 = vsel %vm929, %v931, %v927
        %v933 = vmul.f32 %v874, %v932
        %v934 = vrcp.pop %v888
        %v935 = vmul.f32 %v888, %v934
        %v936 = vsub.f32 1.0, %v935
        %v937 = vmul.f32 %v934, %v936
        %v938 = vadd.f32 %v934, %v937
        %vm939 = vweird.f32 %v888
        %vm940 = vweird.f32 %v934
        %vm941 = vmor %vm939, %vm940
        %v942 = vsel %vm941, %v934, %v938
        %v943 = vand.u32 2147483647, %v888
        %vm944 = vcmp.eq.f32.partialorder %v943, 8.507059e+37
        %v945 = vand.u32 %v888, 2147483648
        %v946 = vor.u32 1.1754944e-38, %v945
        %v947 = vsel %vm944, %v946, %v942
        %v948 = vmul.f32 %v876, %v947
        %v949 = vpack.c.bf16 %v918, %v903
        %v950 = vpack.c.bf16 %v948, %v933
        %v955 = vunpack.c.l.b16 %v799
        %v956 = vunpack.c.l.b16 %v800
        %v957 = vunpack.c.l.b16 %v801
        %v958 = vunpack.c.l.b16 %v802
        %v959 = vpack.c.b16 %v956, %v955
        %v960 = vpack.c.b16 %v958, %v957
        %v964 = vsel %vm817, %v949, 0
        %v967 = vsel %vm817, %v950, 0
        %969 = vmatpush.bf16.msra.mxu0 0
        %970 = vmatpush.bf16.msra.mxu0 0
        %971 = vmatpush.bf16.msra.mxu0 0
        %972 = vmatpush.bf16.msra.mxu0 0
        %973 = vmatpush.bf16.msra.mxu0 0
        %974 = vmatpush.bf16.msra.mxu0 0
        %975 = vmatpush.bf16.msra.mxu0 %v960
        %976 = vmatpush.bf16.msra.mxu0 %v959
        %977 = vmatmul.bf16.gmra.mxu0 %v964
        %v978 = vpop.f32.mrf.mxu0
        %v979 = vadd.f32 0.0, %v978
        %v980 = vpop.f32.mrf.mxu0
        %v981 = vadd.f32 0.0, %v980
        %982 = vmatmul.bf16.gmra.mxu0 %v967
        %v983 = vpop.f32.mrf.mxu0
        %v984 = vadd.f32 0.0, %v983
        %v985 = vpop.f32.mrf.mxu0
        %v986 = vadd.f32 0.0, %v985
        %987 = vdwg.mxu0
        %988 = vrot.lane.b32.xlu0 %v811, 96
        %v989 = vpop.permute.xlu0 %988
        %990 = vrot.lane.b32.xlu0 %v812, 96
        %v991 = vpop.permute.xlu0 %990
        %992 = vrot.lane.b32.xlu0 %v811, 32
        %v993 = vpop.permute.xlu0 %992
        %994 = vrot.lane.b32.xlu0 %v812, 32
        %v995 = vpop.permute.xlu0 %994
        %v997 = vsel %vm817, %v989, 0
        %v1000 = vsel %vm817, %v991, 0
        %v1003 = vsel %vm817, %v993, 0
        %v1006 = vsel %vm817, %v995, 0
        %1008 = vmatpush.bf16.xpose.msra.mxu0 0
        %1009 = vmatpush.bf16.xpose.msra.mxu0 0
        %1010 = vmatpush.bf16.xpose.msra.mxu0 0
        %1011 = vmatpush.bf16.xpose.msra.mxu0 0
        %1012 = vmatpush.bf16.xpose.msra.mxu0 0
        %1013 = vmatpush.bf16.xpose.msra.mxu0 0
        %1014 = vmatpush.bf16.xpose.msra.mxu0 %v1006
        %1015 = vmatpush.bf16.xpose.msra.mxu0 %v1003
        %1016 = vmatmul.bf16.gmra.mxu0 %v997
        %v1017 = vpop.f32.mrf.mxu0
        %v1018 = vadd.f32 0.0, %v1017
        %v1019 = vpop.f32.mrf.mxu0
        %v1020 = vadd.f32 0.0, %v1019
        %1021 = vmatmul.bf16.gmra.mxu0 %v1000
        %v1022 = vpop.f32.mrf.mxu0
        %v1023 = vadd.f32 0.0, %v1022
        %v1024 = vpop.f32.mrf.mxu0
        %v1025 = vadd.f32 0.0, %v1024
        %1026 = vdwg.mxu0
        %v1027 = vmul.f32 %v1018, 0.17677669
        %v1028 = vmul.f32 %v1020, 0.17677669
        %v1029 = vmul.f32 %v1023, 0.17677669
        %v1030 = vmul.f32 %v1025, 0.17677669
        %v1031 = vsel %vm817, %v1027, -inf
        %1032 = vmax.xlane.f32.xlu0 %v1031
        %v1033 = vpop.xlane.xlu0 %1032
        %v1034 = vsel %vm817, %v1028, -inf
        %1035 = vmax.xlane.f32.xlu0 %v1034
        %v1036 = vpop.xlane.xlu0 %1035
        %v1037 = vsel %vm817, %v1029, -inf
        %1038 = vmax.xlane.f32.xlu0 %v1037
        %v1039 = vpop.xlane.xlu0 %1038
        %v1040 = vsel %vm817, %v1030, -inf
        %1041 = vmax.xlane.f32.xlu0 %v1040
        %v1042 = vpop.xlane.xlu0 %1041
        %v1043 = vsub.f32 %v1027, %v1033
        %v1044 = vsub.f32 %v1028, %v1036
        %v1045 = vsub.f32 %v1029, %v1039
        %v1046 = vsub.f32 %v1030, %v1042
        %v1047 = vmul.f32 %v1043, 1.442695
        %v1048 = vpow.pop %v1047
        %v1049 = vmul.f32 %v1044, 1.442695
        %v1050 = vpow.pop %v1049
        %v1051 = vmul.f32 %v1045, 1.442695
        %v1052 = vpow.pop %v1051
        %v1053 = vmul.f32 %v1046, 1.442695
        %v1054 = vpow.pop %v1053
        %v1055 = vsel %vm817, %v1048, 0.0
        %1056 = vadd.xlane.f32.xlu0 %v1055
        %v1057 = vpop.xlane.xlu0 %1056
        %v1058 = vsel %vm817, %v1050, 0.0
        %1059 = vadd.xlane.f32.xlu0 %v1058
        %v1060 = vpop.xlane.xlu0 %1059
        %v1061 = vsel %vm817, %v1052, 0.0
        %1062 = vadd.xlane.f32.xlu0 %v1061
        %v1063 = vpop.xlane.xlu0 %1062
        %v1064 = vsel %vm817, %v1054, 0.0
        %1065 = vadd.xlane.f32.xlu0 %v1064
        %v1066 = vpop.xlane.xlu0 %1065
        %v1067 = vrcp.pop %v1057
        %v1068 = vmul.f32 %v1057, %v1067
        %v1069 = vsub.f32 1.0, %v1068
        %v1070 = vmul.f32 %v1067, %v1069
        %v1071 = vadd.f32 %v1067, %v1070
        %vm1072 = vweird.f32 %v1057
        %vm1073 = vweird.f32 %v1067
        %vm1074 = vmor %vm1072, %vm1073
        %v1075 = vsel %vm1074, %v1067, %v1071
        %v1076 = vand.u32 2147483647, %v1057
        %vm1077 = vcmp.eq.f32.partialorder %v1076, 8.507059e+37
        %v1078 = vand.u32 %v1057, 2147483648
        %v1079 = vor.u32 1.1754944e-38, %v1078
        %v1080 = vsel %vm1077, %v1079, %v1075
        %v1081 = vmul.f32 %v1048, %v1080
        %v1082 = vrcp.pop %v1060
        %v1083 = vmul.f32 %v1060, %v1082
        %v1084 = vsub.f32 1.0, %v1083
        %v1085 = vmul.f32 %v1082, %v1084
        %v1086 = vadd.f32 %v1082, %v1085
        %vm1087 = vweird.f32 %v1060
        %vm1088 = vweird.f32 %v1082
        %vm1089 = vmor %vm1087, %vm1088
        %v1090 = vsel %vm1089, %v1082, %v1086
        %v1091 = vand.u32 2147483647, %v1060
        %vm1092 = vcmp.eq.f32.partialorder %v1091, 8.507059e+37
        %v1093 = vand.u32 %v1060, 2147483648
        %v1094 = vor.u32 1.1754944e-38, %v1093
        %v1095 = vsel %vm1092, %v1094, %v1090
        %v1096 = vmul.f32 %v1050, %v1095
        %v1097 = vrcp.pop %v1063
        %v1098 = vmul.f32 %v1063, %v1097
        %v1099 = vsub.f32 1.0, %v1098
        %v1100 = vmul.f32 %v1097, %v1099
        %v1101 = vadd.f32 %v1097, %v1100
        %vm1102 = vweird.f32 %v1063
        %vm1103 = vweird.f32 %v1097
        %vm1104 = vmor %vm1102, %vm1103
        %v1105 = vsel %vm1104, %v1097, %v1101
        %v1106 = vand.u32 2147483647, %v1063
        %vm1107 = vcmp.eq.f32.partialorder %v1106, 8.507059e+37
        %v1108 = vand.u32 %v1063, 2147483648
        %v1109 = vor.u32 1.1754944e-38, %v1108
        %v1110 = vsel %vm1107, %v1109, %v1105
        %v1111 = vmul.f32 %v1052, %v1110
        %v1112 = vrcp.pop %v1066
        %v1113 = vmul.f32 %v1066, %v1112
        %v1114 = vsub.f32 1.0, %v1113
        %v1115 = vmul.f32 %v1112, %v1114
        %v1116 = vadd.f32 %v1112, %v1115
        %vm1117 = vweird.f32 %v1066
        %vm1118 = vweird.f32 %v1112
        %vm1119 = vmor %vm1117, %vm1118
        %v1120 = vsel %vm1119, %v1112, %v1116
        %v1121 = vand.u32 2147483647, %v1066
        %vm1122 = vcmp.eq.f32.partialorder %v1121, 8.507059e+37
        %v1123 = vand.u32 %v1066, 2147483648
        %v1124 = vor.u32 1.1754944e-38, %v1123
        %v1125 = vsel %vm1122, %v1124, %v1120
        %v1126 = vmul.f32 %v1054, %v1125
        %v1127 = vpack.c.bf16 %v1096, %v1081
        %v1128 = vpack.c.bf16 %v1126, %v1111
        %1129 = vrot.lane.b32.xlu0 %v959, 96
        %v1130 = vpop.permute.xlu0 %1129
        %1131 = vrot.lane.b32.xlu0 %v960, 96
        %v1132 = vpop.permute.xlu0 %1131
        %v1136 = vsel %vm817, %v1127, 0
        %v1139 = vsel %vm817, %v1128, 0
        %1141 = vmatpush.bf16.msra.mxu0 0
        %1142 = vmatpush.bf16.msra.mxu0 0
        %1143 = vmatpush.bf16.msra.mxu0 0
        %1144 = vmatpush.bf16.msra.mxu0 0
        %1145 = vmatpush.bf16.msra.mxu0 0
        %1146 = vmatpush.bf16.msra.mxu0 0
        %1147 = vmatpush.bf16.msra.mxu0 %v1132
        %1148 = vmatpush.bf16.msra.mxu0 %v1130
        %1149 = vmatmul.bf16.gmra.mxu0 %v1136
        %v1150 = vpop.f32.mrf.mxu0
        %v1151 = vadd.f32 0.0, %v1150
        %v1152 = vpop.f32.mrf.mxu0
        %v1153 = vadd.f32 0.0, %v1152
        %1154 = vmatmul.bf16.gmra.mxu0 %v1139
        %v1155 = vpop.f32.mrf.mxu0
        %v1156 = vadd.f32 0.0, %v1155
        %v1157 = vpop.f32.mrf.mxu0
        %v1158 = vadd.f32 0.0, %v1157
        %1159 = vdwg.mxu0
        %1164 = vrot.lane.b32.xlu0 %v1151, 32
        %v1165 = vpop.permute.xlu0 %1164
        %1166 = vrot.lane.b32.xlu0 %v1153, 32
        %v1167 = vpop.permute.xlu0 %1166
        %1168 = vrot.lane.b32.xlu0 %v1156, 32
        %v1169 = vpop.permute.xlu0 %1168
        %1170 = vrot.lane.b32.xlu0 %v1158, 32
        %v1171 = vpop.permute.xlu0 %1170
        %v1176 = vsel %vm817, %v979, %v1165
        %v1177 = vsel %vm817, %v981, %v1167
        %v1178 = vsel %vm817, %v984, %v1169
        %v1179 = vsel %vm817, %v986, %v1171
        %v1180 = vpack.c.bf16 %v1177, %v1176
        %v1181 = vld [vmem:[%s6] sm:$0xf]
        %v1182 = vld [vmem:[%s6 + $0x4] sm:$0xf]
        %v1183 = vld [vmem:[%s6 + $0x8] sm:$0xf]
        %v1184 = vld [vmem:[%s6 + $0xc] sm:$0xf]
        %v1185 = vld [vmem:[%s6 + $0x10] sm:$0xf]
        %v1186 = vld [vmem:[%s6 + $0x14] sm:$0xf]
        %v1187 = vld [vmem:[%s6 + $0x18] sm:$0xf]
        %v1188 = vld [vmem:[%s6 + $0x1c] sm:$0xf]
        %v1189 = vld [vmem:[%s7] sm:$0x1]
        %v1190 = vperm.slane %v1189, 0
        %v1199 = vunpack.c.l.b16 %v1181
        %v1200 = vunpack.c.l.b16 %v1182
        %v1201 = vunpack.c.l.b16 %v1183
        %v1202 = vunpack.c.l.b16 %v1184
        %v1203 = vunpack.c.l.b16 %v1185
        %v1204 = vunpack.c.l.b16 %v1186
        %v1205 = vunpack.c.l.b16 %v1187
        %v1206 = vunpack.c.l.b16 %v1188
        %v1207 = vpack.c.b16 %v1200, %v1199
        %v1208 = vpack.c.b16 %v1202, %v1201
        %v1209 = vpack.c.b16 %v1204, %v1203
        %v1210 = vpack.c.b16 %v1206, %v1205
        %v1216 = vsel %vm511, %v1180, 0
        %1218 = vmatpush.bf16.msra.mxu0 0
        %1219 = vmatpush.bf16.msra.mxu0 0
        %1220 = vmatpush.bf16.msra.mxu0 0
        %1221 = vmatpush.bf16.msra.mxu0 0
        %1222 = vmatpush.bf16.msra.mxu0 %v1210
        %1223 = vmatpush.bf16.msra.mxu0 %v1209
        %1224 = vmatpush.bf16.msra.mxu0 %v1208
        %1225 = vmatpush.bf16.msra.mxu0 %v1207
        %1226 = vmatmul.bf16.gmra.mxu0 %v1216
        %v1227 = vpop.f32.mrf.mxu0
        %v1228 = vadd.f32 %v1190, %v1227
        %v1229 = vpop.f32.mrf.mxu0
        %v1230 = vadd.f32 %v1190, %v1229
        %1231 = vdwg.mxu0
        %v1232 = vpack.c.bf16 %v1179, %v1178
        %s1233 = scalar_lea.vmem %s6, 32
        %v1234 = vld [vmem:[%s1233] sm:$0xf]
        %v1235 = vld [vmem:[%s1233 + $0x4] sm:$0xf]
        %v1236 = vld [vmem:[%s1233 + $0x8] sm:$0xf]
        %v1237 = vld [vmem:[%s1233 + $0xc] sm:$0xf]
        %v1238 = vld [vmem:[%s1233 + $0x10] sm:$0xf]
        %v1239 = vld [vmem:[%s1233 + $0x14] sm:$0xf]
        %v1240 = vld [vmem:[%s1233 + $0x18] sm:$0xf]
        %v1241 = vld [vmem:[%s1233 + $0x1c] sm:$0xf]
        %v1242 = vld [vmem:[%s7 + $0x1] sm:$0x1]
        %v1243 = vperm.slane %v1242, 0
        %v1252 = vunpack.c.l.b16 %v1234
        %v1253 = vunpack.c.l.b16 %v1235
        %v1254 = vunpack.c.l.b16 %v1236
        %v1255 = vunpack.c.l.b16 %v1237
        %v1256 = vunpack.c.l.b16 %v1238
        %v1257 = vunpack.c.l.b16 %v1239
        %v1258 = vunpack.c.l.b16 %v1240
        %v1259 = vunpack.c.l.b16 %v1241
        %v1260 = vpack.c.b16 %v1253, %v1252
        %v1261 = vpack.c.b16 %v1255, %v1254
        %v1262 = vpack.c.b16 %v1257, %v1256
        %v1263 = vpack.c.b16 %v1259, %v1258
        %v1269 = vsel %vm511, %v1232, 0
        %1271 = vmatpush.bf16.msra.mxu0 0
        %1272 = vmatpush.bf16.msra.mxu0 0
        %1273 = vmatpush.bf16.msra.mxu0 0
        %1274 = vmatpush.bf16.msra.mxu0 0
        %1275 = vmatpush.bf16.msra.mxu0 %v1263
        %1276 = vmatpush.bf16.msra.mxu0 %v1262
        %1277 = vmatpush.bf16.msra.mxu0 %v1261
        %1278 = vmatpush.bf16.msra.mxu0 %v1260
        %1279 = vmatmul.bf16.gmra.mxu0 %v1269
        %v1280 = vpop.f32.mrf.mxu0
        %v1281 = vadd.f32 %v1243, %v1280
        %v1282 = vpop.f32.mrf.mxu0
        %v1283 = vadd.f32 %v1243, %v1282
        %1284 = vdwg.mxu0
        %v1285 = vld [vmem:[%s8] sm:$0xff]
        %v1286 = vld [vmem:[%s8 + $0x8] sm:$0xff]
        %v1287 = vld [vmem:[%s8 + $0x10] sm:$0xff]
        %v1288 = vld [vmem:[%s8 + $0x18] sm:$0xff]
        %v1289 = vld [vmem:[%s8 + $0x20] sm:$0xff]
        %v1290 = vld [vmem:[%s8 + $0x28] sm:$0xff]
        %v1291 = vld [vmem:[%s8 + $0x30] sm:$0xff]
        %v1292 = vld [vmem:[%s8 + $0x38] sm:$0xff]
        %v1293 = vld [vmem:[%s9] ss:$2 sm:$0x3]
        %v1294 = vld [vmem:[%s10] sm:$0xf]
        %v1295 = vld [vmem:[%s10 + $0x4] sm:$0xf]
        %v1296 = vld [vmem:[%s10 + $0x8] sm:$0xf]
        %v1297 = vld [vmem:[%s10 + $0xc] sm:$0xf]
        %v1298 = vld [vmem:[%s10 + $0x10] sm:$0xf]
        %v1299 = vld [vmem:[%s10 + $0x14] sm:$0xf]
        %v1300 = vld [vmem:[%s10 + $0x18] sm:$0xf]
        %v1301 = vld [vmem:[%s10 + $0x1c] sm:$0xf]
        %v1302 = vld [vmem:[%s10 + $0x20] sm:$0xf]
        %v1303 = vld [vmem:[%s10 + $0x24] sm:$0xf]
        %v1304 = vld [vmem:[%s10 + $0x28] sm:$0xf]
        %v1305 = vld [vmem:[%s10 + $0x2c] sm:$0xf]
        %v1306 = vld [vmem:[%s10 + $0x30] sm:$0xf]
        %v1307 = vld [vmem:[%s10 + $0x34] sm:$0xf]
        %v1308 = vld [vmem:[%s10 + $0x38] sm:$0xf]
        %v1309 = vld [vmem:[%s10 + $0x3c] sm:$0xf]
        %v1310 = vld [vmem:[%s10 + $0x40] sm:$0xf]
        %v1311 = vld [vmem:[%s10 + $0x44] sm:$0xf]
        %v1312 = vld [vmem:[%s10 + $0x48] sm:$0xf]
        %v1313 = vld [vmem:[%s10 + $0x4c] sm:$0xf]
        %v1314 = vld [vmem:[%s10 + $0x50] sm:$0xf]
        %v1315 = vld [vmem:[%s10 + $0x54] sm:$0xf]
        %v1316 = vld [vmem:[%s10 + $0x58] sm:$0xf]
        %v1317 = vld [vmem:[%s10 + $0x5c] sm:$0xf]
        %v1318 = vld [vmem:[%s10 + $0x60] sm:$0xf]
        %v1319 = vld [vmem:[%s10 + $0x64] sm:$0xf]
        %v1320 = vld [vmem:[%s10 + $0x68] sm:$0xf]
        %v1321 = vld [vmem:[%s10 + $0x6c] sm:$0xf]
        %v1322 = vld [vmem:[%s10 + $0x70] sm:$0xf]
        %v1323 = vld [vmem:[%s10 + $0x74] sm:$0xf]
        %v1324 = vld [vmem:[%s10 + $0x78] sm:$0xf]
        %v1325 = vld [vmem:[%s10 + $0x7c] sm:$0xf]
        %v1326 = vld [vmem:[%s11] sm:$0x1]
        %v1327 = vperm.slane %v509, 2
        %v1328 = vmul.f32 %v1327, %v1228
        %v1329 = vmul.f32 %v1327, %v1230
        %v1330 = vadd.f32 %v505, %v1328
        %v1331 = vadd.f32 %v506, %v1329
        %v1332 = vsel %vm511, %v1330, 0.0
        %1333 = vadd.xlane.f32.xlu0 %v1332
        %v1334 = vpop.xlane.xlu0 %1333
        %v1335 = vsel %vm511, %v1331, 0.0
        %1336 = vadd.xlane.f32.xlu0 %v1335
        %v1337 = vpop.xlane.xlu0 %1336
        %v1338 = vmul.f32 %v1334, %v524
        %v1339 = vmul.f32 %v1337, %v524
        %v1340 = vsub.f32 %v1330, %v1338
        %v1341 = vsub.f32 %v1331, %v1339
        %v1342 = vmul.f32 %v1340, %v1340
        %v1343 = vmul.f32 %v1341, %v1341
        %v1344 = vsel %vm511, %v1342, 0.0
        %1345 = vadd.xlane.f32.xlu0 %v1344
        %v1346 = vpop.xlane.xlu0 %1345
        %v1347 = vsel %vm511, %v1343, 0.0
        %1348 = vadd.xlane.f32.xlu0 %v1347
        %v1349 = vpop.xlane.xlu0 %1348
        %v1350 = vmul.f32 %v1346, %v524
        %v1351 = vmul.f32 %v1349, %v524
        %v1352 = vadd.f32 %v1350, 1e-06
        %v1353 = vadd.f32 %v1351, 1e-06
        %v1354 = vrsqrt.pop %v1352
        %v1355 = vmul.f32 %v1354, %v1352
        %v1356 = vmul.f32 %v1355, %v1354
        %v1357 = vmul.f32 0.5, %v1356
        %v1358 = vsub.f32 1.5, %v1357
        %v1359 = vmul.f32 %v1354, %v1358
        %vm1360 = vweird.f32 %v1352
        %vm1361 = vweird.f32 %v1354
        %vm1362 = vmor %vm1360, %vm1361
        %v1363 = vsel %vm1362, %v1354, %v1359
        %v1364 = vrsqrt.pop %v1353
        %v1365 = vmul.f32 %v1364, %v1353
        %v1366 = vmul.f32 %v1365, %v1364
        %v1367 = vmul.f32 0.5, %v1366
        %v1368 = vsub.f32 1.5, %v1367
        %v1369 = vmul.f32 %v1364, %v1368
        %vm1370 = vweird.f32 %v1353
        %vm1371 = vweird.f32 %v1364
        %vm1372 = vmor %vm1370, %vm1371
        %v1373 = vsel %vm1372, %v1364, %v1369
        %v1374 = vmul.f32 %v1340, %v1363
        %v1375 = vmul.f32 %v1341, %v1373
        %v1376 = vperm.slane %v563, 4
        %v1377 = vmul.f32 %v1374, %v1376
        %v1378 = vmul.f32 %v1375, %v1376
        %v1379 = vperm.slane %v509, 3
        %v1380 = vadd.f32 %v1377, %v1379
        %v1381 = vadd.f32 %v1378, %v1379
        %v1382 = vpack.c.bf16 %v1381, %v1380
        %v1384 = vperm.slane %v1293, 0
        %v1385 = vperm.slane %v1293, 1
        %v1396 = vunpack.c.l.b16 %v1285
        %v1397 = vunpack.c.h.b16 %v1285
        %v1398 = vunpack.c.l.b16 %v1286
        %v1399 = vunpack.c.h.b16 %v1286
        %v1400 = vunpack.c.l.b16 %v1287
        %v1401 = vunpack.c.h.b16 %v1287
        %v1402 = vunpack.c.l.b16 %v1288
        %v1403 = vunpack.c.h.b16 %v1288
        %v1404 = vunpack.c.l.b16 %v1289
        %v1405 = vunpack.c.h.b16 %v1289
        %v1406 = vunpack.c.l.b16 %v1290
        %v1407 = vunpack.c.h.b16 %v1290
        %v1408 = vunpack.c.l.b16 %v1291
        %v1409 = vunpack.c.h.b16 %v1291
        %v1410 = vunpack.c.l.b16 %v1292
        %v1411 = vunpack.c.h.b16 %v1292
        %v1412 = vpack.c.b16 %v1398, %v1396
        %v1413 = vpack.c.b16 %v1399, %v1397
        %v1414 = vpack.c.b16 %v1402, %v1400
        %v1415 = vpack.c.b16 %v1403, %v1401
        %v1416 = vpack.c.b16 %v1406, %v1404
        %v1417 = vpack.c.b16 %v1407, %v1405
        %v1418 = vpack.c.b16 %v1410, %v1408
        %v1419 = vpack.c.b16 %v1411, %v1409
        %v1429 = vsel %vm511, %v1382, 0
        %1431 = vmatpush.bf16.msra.mxu0 0
        %1432 = vmatpush.bf16.msra.mxu0 0
        %1433 = vmatpush.bf16.msra.mxu0 0
        %1434 = vmatpush.bf16.msra.mxu0 0
        %1435 = vmatpush.bf16.msra.mxu0 %v1418
        %1436 = vmatpush.bf16.msra.mxu0 %v1416
        %1437 = vmatpush.bf16.msra.mxu0 %v1414
        %1438 = vmatpush.bf16.msra.mxu0 %v1412
        %1439 = vmatmul.bf16.gmra.mxu0 %v1429
        %v1440 = vpop.f32.mrf.mxu0
        %v1441 = vadd.f32 %v1384, %v1440
        %v1442 = vpop.f32.mrf.mxu0
        %v1443 = vadd.f32 %v1384, %v1442
        %1444 = vdwg.mxu0
        %1445 = vmatpush.bf16.msra.mxu0 0
        %1446 = vmatpush.bf16.msra.mxu0 0
        %1447 = vmatpush.bf16.msra.mxu0 0
        %1448 = vmatpush.bf16.msra.mxu0 0
        %1449 = vmatpush.bf16.msra.mxu0 %v1419
        %1450 = vmatpush.bf16.msra.mxu0 %v1417
        %1451 = vmatpush.bf16.msra.mxu0 %v1415
        %1452 = vmatpush.bf16.msra.mxu0 %v1413
        %1453 = vmatmul.bf16.gmra.mxu0 %v1429
        %v1454 = vpop.f32.mrf.mxu0
        %v1455 = vadd.f32 %v1385, %v1454
        %v1456 = vpop.f32.mrf.mxu0
        %v1457 = vadd.f32 %v1385, %v1456
        %1458 = vdwg.mxu0
        %v1459 = vmul.f32 %v1441, 0.5
        %v1460 = vmul.f32 %v1455, 0.5
        %v1461 = vmul.f32 %v1443, 0.5
        %v1462 = vmul.f32 %v1457, 0.5
        %v1463 = vmul.f32 %v1441, 0.044715
        %v1464 = vmul.f32 %v1455, 0.044715
        %v1465 = vmul.f32 %v1443, 0.044715
        %v1466 = vmul.f32 %v1457, 0.044715
        %v1467 = vmul.f32 %v1463, %v1441
        %v1468 = vmul.f32 %v1464, %v1455
        %v1469 = vmul.f32 %v1465, %v1443
        %v1470 = vmul.f32 %v1466, %v1457
        %v1471 = vmul.f32 %v1467, %v1441
        %v1472 = vmul.f32 %v1468, %v1455
        %v1473 = vmul.f32 %v1469, %v1443
        %v1474 = vmul.f32 %v1470, %v1457
        %v1475 = vadd.f32 %v1441, %v1471
        %v1476 = vadd.f32 %v1455, %v1472
        %v1477 = vadd.f32 %v1443, %v1473
        %v1478 = vadd.f32 %v1457, %v1474
        %v1479 = vmul.f32 %v1475, 0.7978846
        %v1480 = vmul.f32 %v1476, 0.7978846
        %v1481 = vmul.f32 %v1477, 0.7978846
        %v1482 = vmul.f32 %v1478, 0.7978846
        %v1483 = vtanh.pop %v1479
        %v1484 = vtanh.pop %v1480
        %v1485 = vtanh.pop %v1481
        %v1486 = vtanh.pop %v1482
        %v1487 = vadd.f32 %v1483, 1.0
        %v1488 = vadd.f32 %v1484, 1.0
        %v1489 = vadd.f32 %v1485, 1.0
        %v1490 = vadd.f32 %v1486, 1.0
        %v1491 = vmul.f32 %v1459, %v1487
        %v1492 = vmul.f32 %v1460, %v1488
        %v1493 = vmul.f32 %v1461, %v1489
        %v1494 = vmul.f32 %v1462, %v1490
        %v1495 = vpack.c.bf16 %v1493, %v1491
        %v1496 = vpack.c.bf16 %v1494, %v1492
        %v1497 = vperm.slane %v1326, 0
        %v1530 = vunpack.c.l.b16 %v1294
        %v1531 = vunpack.c.l.b16 %v1295
        %v1532 = vunpack.c.l.b16 %v1296
        %v1533 = vunpack.c.l.b16 %v1297
        %v1534 = vunpack.c.l.b16 %v1298
        %v1535 = vunpack.c.l.b16 %v1299
        %v1536 = vunpack.c.l.b16 %v1300
        %v1537 = vunpack.c.l.b16 %v1301
        %v1538 = vunpack.c.l.b16 %v1302
        %v1539 = vunpack.c.l.b16 %v1303
        %v1540 = vunpack.c.l.b16 %v1304
        %v1541 = vunpack.c.l.b16 %v1305
        %v1542 = vunpack.c.l.b16 %v1306
        %v1543 = vunpack.c.l.b16 %v1307
        %v1544 = vunpack.c.l.b16 %v1308
        %v1545 = vunpack.c.l.b16 %v1309
        %v1546 = vunpack.c.l.b16 %v1310
        %v1547 = vunpack.c.l.b16 %v1311
        %v1548 = vunpack.c.l.b16 %v1312
        %v1549 = vunpack.c.l.b16 %v1313
        %v1550 = vunpack.c.l.b16 %v1314
        %v1551 = vunpack.c.l.b16 %v1315
        %v1552 = vunpack.c.l.b16 %v1316
        %v1553 = vunpack.c.l.b16 %v1317
        %v1554 = vunpack.c.l.b16 %v1318
        %v1555 = vunpack.c.l.b16 %v1319
        %v1556 = vunpack.c.l.b16 %v1320
        %v1557 = vunpack.c.l.b16 %v1321
        %v1558 = vunpack.c.l.b16 %v1322
        %v1559 = vunpack.c.l.b16 %v1323
        %v1560 = vunpack.c.l.b16 %v1324
        %v1561 = vunpack.c.l.b16 %v1325
        %v1562 = vpack.c.b16 %v1531, %v1530
        %v1563 = vpack.c.b16 %v1533, %v1532
        %v1564 = vpack.c.b16 %v1535, %v1534
        %v1565 = vpack.c.b16 %v1537, %v1536
        %v1566 = vpack.c.b16 %v1539, %v1538
        %v1567 = vpack.c.b16 %v1541, %v1540
        %v1568 = vpack.c.b16 %v1543, %v1542
        %v1569 = vpack.c.b16 %v1545, %v1544
        %v1570 = vpack.c.b16 %v1547, %v1546
        %v1571 = vpack.c.b16 %v1549, %v1548
        %v1572 = vpack.c.b16 %v1551, %v1550
        %v1573 = vpack.c.b16 %v1553, %v1552
        %v1574 = vpack.c.b16 %v1555, %v1554
        %v1575 = vpack.c.b16 %v1557, %v1556
        %v1576 = vpack.c.b16 %v1559, %v1558
        %v1577 = vpack.c.b16 %v1561, %v1560
        %1594 = vmatpush.bf16.msra.mxu0 %v1569
        %1595 = vmatpush.bf16.msra.mxu0 %v1568
        %1596 = vmatpush.bf16.msra.mxu0 %v1567
        %1597 = vmatpush.bf16.msra.mxu0 %v1566
        %1598 = vmatpush.bf16.msra.mxu0 %v1565
        %1599 = vmatpush.bf16.msra.mxu0 %v1564
        %1600 = vmatpush.bf16.msra.mxu0 %v1563
        %1601 = vmatpush.bf16.msra.mxu0 %v1562
        %1602 = vmatmul.bf16.gmra.mxu0 %v1495
        %v1603 = vpop.f32.mrf.mxu0
        %v1604 = vadd.f32 %v1497, %v1603
        %v1605 = vpop.f32.mrf.mxu0
        %v1606 = vadd.f32 %v1497, %v1605
        %1607 = vdwg.mxu0
        %1608 = vmatpush.bf16.msra.mxu0 %v1577
        %1609 = vmatpush.bf16.msra.mxu0 %v1576
        %1610 = vmatpush.bf16.msra.mxu0 %v1575
        %1611 = vmatpush.bf16.msra.mxu0 %v1574
        %1612 = vmatpush.bf16.msra.mxu0 %v1573
        %1613 = vmatpush.bf16.msra.mxu0 %v1572
        %1614 = vmatpush.bf16.msra.mxu0 %v1571
        %1615 = vmatpush.bf16.msra.mxu0 %v1570
        %1616 = vmatmul.bf16.gmra.mxu0 %v1496
        %v1617 = vpop.f32.mrf.mxu0
        %v1618 = vadd.f32 %v1604, %v1617
        %v1619 = vpop.f32.mrf.mxu0
        %v1620 = vadd.f32 %v1606, %v1619
        %1621 = vdwg.mxu0
        %v1622 = vperm.slane %v509, 5
        %v1623 = vmul.f32 %v1622, %v1618
        %v1624 = vmul.f32 %v1622, %v1620
        %v1625 = vadd.f32 %v1330, %v1623
        %v1626 = vadd.f32 %v1331, %v1624
        %1627 = vst.msk [vmem:[%s478] sm:$0xff] %vm511, %v1625
        %1628 = vst.msk [vmem:[%s478 + $0x8] sm:$0xff] %vm511, %v1626
        %s1629 = scalar_lea.vmem %s8, 64
        %v1630 = vld [vmem:[%s1629] sm:$0xff]
        %v1631 = vld [vmem:[%s1629 + $0x8] sm:$0xff]
        %v1632 = vld [vmem:[%s1629 + $0x10] sm:$0xff]
        %v1633 = vld [vmem:[%s1629 + $0x18] sm:$0xff]
        %v1634 = vld [vmem:[%s1629 + $0x20] sm:$0xff]
        %v1635 = vld [vmem:[%s1629 + $0x28] sm:$0xff]
        %v1636 = vld [vmem:[%s1629 + $0x30] sm:$0xff]
        %v1637 = vld [vmem:[%s1629 + $0x38] sm:$0xff]
        %s1638 = scalar_lea.vmem %s9, 1
        %v1639 = vld [vmem:[%s1638] ss:$2 sm:$0x3]
        %s1640 = scalar_lea.vmem %s10, 128
        %v1641 = vld [vmem:[%s1640] sm:$0xf]
        %v1642 = vld [vmem:[%s1640 + $0x4] sm:$0xf]
        %v1643 = vld [vmem:[%s1640 + $0x8] sm:$0xf]
        %v1644 = vld [vmem:[%s1640 + $0xc] sm:$0xf]
        %v1645 = vld [vmem:[%s1640 + $0x10] sm:$0xf]
        %v1646 = vld [vmem:[%s1640 + $0x14] sm:$0xf]
        %v1647 = vld [vmem:[%s1640 + $0x18] sm:$0xf]
        %v1648 = vld [vmem:[%s1640 + $0x1c] sm:$0xf]
        %v1649 = vld [vmem:[%s1640 + $0x20] sm:$0xf]
        %v1650 = vld [vmem:[%s1640 + $0x24] sm:$0xf]
        %v1651 = vld [vmem:[%s1640 + $0x28] sm:$0xf]
        %v1652 = vld [vmem:[%s1640 + $0x2c] sm:$0xf]
        %v1653 = vld [vmem:[%s1640 + $0x30] sm:$0xf]
        %v1654 = vld [vmem:[%s1640 + $0x34] sm:$0xf]
        %v1655 = vld [vmem:[%s1640 + $0x38] sm:$0xf]
        %v1656 = vld [vmem:[%s1640 + $0x3c] sm:$0xf]
        %v1657 = vld [vmem:[%s1640 + $0x40] sm:$0xf]
        %v1658 = vld [vmem:[%s1640 + $0x44] sm:$0xf]
        %v1659 = vld [vmem:[%s1640 + $0x48] sm:$0xf]
        %v1660 = vld [vmem:[%s1640 + $0x4c] sm:$0xf]
        %v1661 = vld [vmem:[%s1640 + $0x50] sm:$0xf]
        %v1662 = vld [vmem:[%s1640 + $0x54] sm:$0xf]
        %v1663 = vld [vmem:[%s1640 + $0x58] sm:$0xf]
        %v1664 = vld [vmem:[%s1640 + $0x5c] sm:$0xf]
        %v1665 = vld [vmem:[%s1640 + $0x60] sm:$0xf]
        %v1666 = vld [vmem:[%s1640 + $0x64] sm:$0xf]
        %v1667 = vld [vmem:[%s1640 + $0x68] sm:$0xf]
        %v1668 = vld [vmem:[%s1640 + $0x6c] sm:$0xf]
        %v1669 = vld [vmem:[%s1640 + $0x70] sm:$0xf]
        %v1670 = vld [vmem:[%s1640 + $0x74] sm:$0xf]
        %v1671 = vld [vmem:[%s1640 + $0x78] sm:$0xf]
        %v1672 = vld [vmem:[%s1640 + $0x7c] sm:$0xf]
        %v1673 = vld [vmem:[%s11 + $0x1] sm:$0x1]
        %v1674 = vperm.slane %v510, 2
        %v1675 = vmul.f32 %v1674, %v1281
        %v1676 = vmul.f32 %v1674, %v1283
        %v1677 = vadd.f32 %v507, %v1675
        %v1678 = vadd.f32 %v508, %v1676
        %v1679 = vsel %vm511, %v1677, 0.0
        %1680 = vadd.xlane.f32.xlu0 %v1679
        %v1681 = vpop.xlane.xlu0 %1680
        %v1682 = vsel %vm511, %v1678, 0.0
        %1683 = vadd.xlane.f32.xlu0 %v1682
        %v1684 = vpop.xlane.xlu0 %1683
        %v1685 = vmul.f32 %v1681, %v524
        %v1686 = vmul.f32 %v1684, %v524
        %v1687 = vsub.f32 %v1677, %v1685
        %v1688 = vsub.f32 %v1678, %v1686
        %v1689 = vmul.f32 %v1687, %v1687
        %v1690 = vmul.f32 %v1688, %v1688
        %v1691 = vsel %vm511, %v1689, 0.0
        %1692 = vadd.xlane.f32.xlu0 %v1691
        %v1693 = vpop.xlane.xlu0 %1692
        %v1694 = vsel %vm511, %v1690, 0.0
        %1695 = vadd.xlane.f32.xlu0 %v1694
        %v1696 = vpop.xlane.xlu0 %1695
        %v1697 = vmul.f32 %v1693, %v524
        %v1698 = vmul.f32 %v1696, %v524
        %v1699 = vadd.f32 %v1697, 1e-06
        %v1700 = vadd.f32 %v1698, 1e-06
        %v1701 = vrsqrt.pop %v1699
        %v1702 = vmul.f32 %v1701, %v1699
        %v1703 = vmul.f32 %v1702, %v1701
        %v1704 = vmul.f32 0.5, %v1703
        %v1705 = vsub.f32 1.5, %v1704
        %v1706 = vmul.f32 %v1701, %v1705
        %vm1707 = vweird.f32 %v1699
        %vm1708 = vweird.f32 %v1701
        %vm1709 = vmor %vm1707, %vm1708
        %v1710 = vsel %vm1709, %v1701, %v1706
        %v1711 = vrsqrt.pop %v1700
        %v1712 = vmul.f32 %v1711, %v1700
        %v1713 = vmul.f32 %v1712, %v1711
        %v1714 = vmul.f32 0.5, %v1713
        %v1715 = vsub.f32 1.5, %v1714
        %v1716 = vmul.f32 %v1711, %v1715
        %vm1717 = vweird.f32 %v1700
        %vm1718 = vweird.f32 %v1711
        %vm1719 = vmor %vm1717, %vm1718
        %v1720 = vsel %vm1719, %v1711, %v1716
        %v1721 = vmul.f32 %v1687, %v1710
        %v1722 = vmul.f32 %v1688, %v1720
        %v1723 = vperm.slane %v614, 4
        %v1724 = vmul.f32 %v1721, %v1723
        %v1725 = vmul.f32 %v1722, %v1723
        %v1726 = vperm.slane %v510, 3
        %v1727 = vadd.f32 %v1724, %v1726
        %v1728 = vadd.f32 %v1725, %v1726
        %v1729 = vpack.c.bf16 %v1728, %v1727
        %v1731 = vperm.slane %v1639, 0
        %v1732 = vperm.slane %v1639, 1
        %v1743 = vunpack.c.l.b16 %v1630
        %v1744 = vunpack.c.h.b16 %v1630
        %v1745 = vunpack.c.l.b16 %v1631
        %v1746 = vunpack.c.h.b16 %v1631
        %v1747 = vunpack.c.l.b16 %v1632
        %v1748 = vunpack.c.h.b16 %v1632
        %v1749 = vunpack.c.l.b16 %v1633
        %v1750 = vunpack.c.h.b16 %v1633
        %v1751 = vunpack.c.l.b16 %v1634
        %v1752 = vunpack.c.h.b16 %v1634
        %v1753 = vunpack.c.l.b16 %v1635
        %v1754 = vunpack.c.h.b16 %v1635
        %v1755 = vunpack.c.l.b16 %v1636
        %v1756 = vunpack.c.h.b16 %v1636
        %v1757 = vunpack.c.l.b16 %v1637
        %v1758 = vunpack.c.h.b16 %v1637
        %v1759 = vpack.c.b16 %v1745, %v1743
        %v1760 = vpack.c.b16 %v1746, %v1744
        %v1761 = vpack.c.b16 %v1749, %v1747
        %v1762 = vpack.c.b16 %v1750, %v1748
        %v1763 = vpack.c.b16 %v1753, %v1751
        %v1764 = vpack.c.b16 %v1754, %v1752
        %v1765 = vpack.c.b16 %v1757, %v1755
        %v1766 = vpack.c.b16 %v1758, %v1756
        %v1776 = vsel %vm511, %v1729, 0
        %1778 = vmatpush.bf16.msra.mxu0 0
        %1779 = vmatpush.bf16.msra.mxu0 0
        %1780 = vmatpush.bf16.msra.mxu0 0
        %1781 = vmatpush.bf16.msra.mxu0 0
        %1782 = vmatpush.bf16.msra.mxu0 %v1765
        %1783 = vmatpush.bf16.msra.mxu0 %v1763
        %1784 = vmatpush.bf16.msra.mxu0 %v1761
        %1785 = vmatpush.bf16.msra.mxu0 %v1759
        %1786 = vmatmul.bf16.gmra.mxu0 %v1776
        %v1787 = vpop.f32.mrf.mxu0
        %v1788 = vadd.f32 %v1731, %v1787
        %v1789 = vpop.f32.mrf.mxu0
        %v1790 = vadd.f32 %v1731, %v1789
        %1791 = vdwg.mxu0
        %1792 = vmatpush.bf16.msra.mxu0 0
        %1793 = vmatpush.bf16.msra.mxu0 0
        %1794 = vmatpush.bf16.msra.mxu0 0
        %1795 = vmatpush.bf16.msra.mxu0 0
        %1796 = vmatpush.bf16.msra.mxu0 %v1766
        %1797 = vmatpush.bf16.msra.mxu0 %v1764
        %1798 = vmatpush.bf16.msra.mxu0 %v1762
        %1799 = vmatpush.bf16.msra.mxu0 %v1760
        %1800 = vmatmul.bf16.gmra.mxu0 %v1776
        %v1801 = vpop.f32.mrf.mxu0
        %v1802 = vadd.f32 %v1732, %v1801
        %v1803 = vpop.f32.mrf.mxu0
        %v1804 = vadd.f32 %v1732, %v1803
        %1805 = vdwg.mxu0
        %v1806 = vmul.f32 %v1788, 0.5
        %v1807 = vmul.f32 %v1802, 0.5
        %v1808 = vmul.f32 %v1790, 0.5
        %v1809 = vmul.f32 %v1804, 0.5
        %v1810 = vmul.f32 %v1788, 0.044715
        %v1811 = vmul.f32 %v1802, 0.044715
        %v1812 = vmul.f32 %v1790, 0.044715
        %v1813 = vmul.f32 %v1804, 0.044715
        %v1814 = vmul.f32 %v1810, %v1788
        %v1815 = vmul.f32 %v1811, %v1802
        %v1816 = vmul.f32 %v1812, %v1790
        %v1817 = vmul.f32 %v1813, %v1804
        %v1818 = vmul.f32 %v1814, %v1788
        %v1819 = vmul.f32 %v1815, %v1802
        %v1820 = vmul.f32 %v1816, %v1790
        %v1821 = vmul.f32 %v1817, %v1804
        %v1822 = vadd.f32 %v1788, %v1818
        %v1823 = vadd.f32 %v1802, %v1819
        %v1824 = vadd.f32 %v1790, %v1820
        %v1825 = vadd.f32 %v1804, %v1821
        %v1826 = vmul.f32 %v1822, 0.7978846
        %v1827 = vmul.f32 %v1823, 0.7978846
        %v1828 = vmul.f32 %v1824, 0.7978846
        %v1829 = vmul.f32 %v1825, 0.7978846
        %v1830 = vtanh.pop %v1826
        %v1831 = vtanh.pop %v1827
        %v1832 = vtanh.pop %v1828
        %v1833 = vtanh.pop %v1829
        %v1834 = vadd.f32 %v1830, 1.0
        %v1835 = vadd.f32 %v1831, 1.0
        %v1836 = vadd.f32 %v1832, 1.0
        %v1837 = vadd.f32 %v1833, 1.0
        %v1838 = vmul.f32 %v1806, %v1834
        %v1839 = vmul.f32 %v1807, %v1835
        %v1840 = vmul.f32 %v1808, %v1836
        %v1841 = vmul.f32 %v1809, %v1837
        %v1842 = vpack.c.bf16 %v1840, %v1838
        %v1843 = vpack.c.bf16 %v1841, %v1839
        %v1844 = vperm.slane %v1673, 0
        %v1877 = vunpack.c.l.b16 %v1641
        %v1878 = vunpack.c.l.b16 %v1642
        %v1879 = vunpack.c.l.b16 %v1643
        %v1880 = vunpack.c.l.b16 %v1644
        %v1881 = vunpack.c.l.b16 %v1645
        %v1882 = vunpack.c.l.b16 %v1646
        %v1883 = vunpack.c.l.b16 %v1647
        %v1884 = vunpack.c.l.b16 %v1648
        %v1885 = vunpack.c.l.b16 %v1649
        %v1886 = vunpack.c.l.b16 %v1650
        %v1887 = vunpack.c.l.b16 %v1651
        %v1888 = vunpack.c.l.b16 %v1652
        %v1889 = vunpack.c.l.b16 %v1653
        %v1890 = vunpack.c.l.b16 %v1654
        %v1891 = vunpack.c.l.b16 %v1655
        %v1892 = vunpack.c.l.b16 %v1656
        %v1893 = vunpack.c.l.b16 %v1657
        %v1894 = vunpack.c.l.b16 %v1658
        %v1895 = vunpack.c.l.b16 %v1659
        %v1896 = vunpack.c.l.b16 %v1660
        %v1897 = vunpack.c.l.b16 %v1661
        %v1898 = vunpack.c.l.b16 %v1662
        %v1899 = vunpack.c.l.b16 %v1663
        %v1900 = vunpack.c.l.b16 %v1664
        %v1901 = vunpack.c.l.b16 %v1665
        %v1902 = vunpack.c.l.b16 %v1666
        %v1903 = vunpack.c.l.b16 %v1667
        %v1904 = vunpack.c.l.b16 %v1668
        %v1905 = vunpack.c.l.b16 %v1669
        %v1906 = vunpack.c.l.b16 %v1670
        %v1907 = vunpack.c.l.b16 %v1671
        %v1908 = vunpack.c.l.b16 %v1672
        %v1909 = vpack.c.b16 %v1878, %v1877
        %v1910 = vpack.c.b16 %v1880, %v1879
        %v1911 = vpack.c.b16 %v1882, %v1881
        %v1912 = vpack.c.b16 %v1884, %v1883
        %v1913 = vpack.c.b16 %v1886, %v1885
        %v1914 = vpack.c.b16 %v1888, %v1887
        %v1915 = vpack.c.b16 %v1890, %v1889
        %v1916 = vpack.c.b16 %v1892, %v1891
        %v1917 = vpack.c.b16 %v1894, %v1893
        %v1918 = vpack.c.b16 %v1896, %v1895
        %v1919 = vpack.c.b16 %v1898, %v1897
        %v1920 = vpack.c.b16 %v1900, %v1899
        %v1921 = vpack.c.b16 %v1902, %v1901
        %v1922 = vpack.c.b16 %v1904, %v1903
        %v1923 = vpack.c.b16 %v1906, %v1905
        %v1924 = vpack.c.b16 %v1908, %v1907
        %1941 = vmatpush.bf16.msra.mxu0 %v1916
        %1942 = vmatpush.bf16.msra.mxu0 %v1915
        %1943 = vmatpush.bf16.msra.mxu0 %v1914
        %1944 = vmatpush.bf16.msra.mxu0 %v1913
        %1945 = vmatpush.bf16.msra.mxu0 %v1912
        %1946 = vmatpush.bf16.msra.mxu0 %v1911
        %1947 = vmatpush.bf16.msra.mxu0 %v1910
        %1948 = vmatpush.bf16.msra.mxu0 %v1909
        %1949 = vmatmul.bf16.gmra.mxu0 %v1842
        %v1950 = vpop.f32.mrf.mxu0
        %v1951 = vadd.f32 %v1844, %v1950
        %v1952 = vpop.f32.mrf.mxu0
        %v1953 = vadd.f32 %v1844, %v1952
        %1954 = vdwg.mxu0
        %1955 = vmatpush.bf16.msra.mxu0 %v1924
        %1956 = vmatpush.bf16.msra.mxu0 %v1923
        %1957 = vmatpush.bf16.msra.mxu0 %v1922
        %1958 = vmatpush.bf16.msra.mxu0 %v1921
        %1959 = vmatpush.bf16.msra.mxu0 %v1920
        %1960 = vmatpush.bf16.msra.mxu0 %v1919
        %1961 = vmatpush.bf16.msra.mxu0 %v1918
        %1962 = vmatpush.bf16.msra.mxu0 %v1917
        %1963 = vmatmul.bf16.gmra.mxu0 %v1843
        %v1964 = vpop.f32.mrf.mxu0
        %v1965 = vadd.f32 %v1951, %v1964
        %v1966 = vpop.f32.mrf.mxu0
        %v1967 = vadd.f32 %v1953, %v1966
        %1968 = vdwg.mxu0
        %v1969 = vperm.slane %v510, 5
        %v1970 = vmul.f32 %v1969, %v1965
        %v1971 = vmul.f32 %v1969, %v1967
        %v1972 = vadd.f32 %v1677, %v1970
        %v1973 = vadd.f32 %v1678, %v1971
        %1974 = vst.msk [vmem:[%s485] sm:$0xff] %vm511, %v1972
        %1975 = vst.msk [vmem:[%s485 + $0x8] sm:$0xff] %vm511, %v1973
        %s1976 = sand.u32 %s311, 1
        %s1977 = scalar_lea.sflag [#allocation3], %s1976
        %s1978 = sand.u32 %s311, 1
        %s1979 = smul.addr %s1978, 16
        %s1980 = scalar_lea.vmem [#allocation2], %s1979
        %s1981 = sand.u32 %s337, 1
        %s1982 = scalar_lea.sflag [#allocation5], %s1981
        %s1983 = sand.u32 %s337, 1
        %s1984 = smul.addr %s1983, 16
        %s1985 = scalar_lea.vmem [#allocation4], %s1984
        // Predicated region
        $region69: #{tpu_custom_call.1} parent=67 // pred_check
          %p1986 = pneg %p321
        $region70: #{tpu_custom_call.1} parent=67 // pred_check_branch
          %1988 = sbr.rel (%p1986) target = $region72
        $region71: #{tpu_custom_call.1} parent=67 // pred_region
          %1990 = vsyncadd %s1977, 0
          %s1991 = smul.addr %s31, 2
          %s1992 = smul.addr %s1991, 8
          %s1993 = scalar_lea.hbm %s12, %s1992
          %s1994 = sshll.u32 %s1980, 4
          %s1995 = int_to_ptr.vmem [resolvable:$true] %s1994
          %s1996 = sshll.u32 %s1993, 4
          %s1997 = int_to_ptr.hbm [resolvable:$true] %s1996
          %2002 = dma.vmem_to_hbm [thread:$0]  %s1995, 256, %s1997, %s1977, 128, 128, 8
        $region72: #{tpu_custom_call.1} parent=67 // pred_fallthru
          _
        // Predicated region
        $region73: #{tpu_custom_call.1} parent=67 // pred_check
          %p2003 = pneg %p347
        $region74: #{tpu_custom_call.1} parent=67 // pred_check_branch
          %2005 = sbr.rel (%p2003) target = $region76
        $region75: #{tpu_custom_call.1} parent=67 // pred_region
          %2007 = vsyncadd %s1982, 0
          %s2008 = smul.addr %s31, 2
          %s2009 = smul.addr %s2008, 8
          %s2010 = scalar_lea.hbm %s13, %s2009
          %s2011 = sshll.u32 %s1985, 4
          %s2012 = int_to_ptr.vmem [resolvable:$true] %s2011
          %s2013 = sshll.u32 %s2010, 4
          %s2014 = int_to_ptr.hbm [resolvable:$true] %s2013
          %2019 = dma.vmem_to_hbm [thread:$0]  %s2012, 256, %s2014, %s1982, 128, 128, 8
        $region76: #{tpu_custom_call.1} parent=67 // pred_fallthru
          _
      $region68: #{tpu_custom_call.1} parent=5 // pred_fallthru
        _
      %p2020 = scmp.le.s32.totalorder 2, %s26
      // Predicated region
      $region77: #{tpu_custom_call.1} parent=5 // pred_check
        %p2021 = pneg %p2020
      $region78: #{tpu_custom_call.1} parent=5 // pred_check_branch
        %2023 = sbr.rel (%p2021) target = $region80
      $region79: #{tpu_custom_call.1} parent=5 // pred_region
        %s2024 = ssub.s32 %s26, 2
        // Predicated region
        $region81: #{tpu_custom_call.1} parent=79 // pred_check
          %p2025 = pneg %p327
        $region82: #{tpu_custom_call.1} parent=79 // pred_check_branch
          %2027 = sbr.rel (%p2025) target = $region84
        $region83: #{tpu_custom_call.1} parent=79 // pred_region
          %s2028 = sand.u32 %s312, 1
          %s2029 = scalar_lea.sflag [#allocation3], %s2028
          %s2030 = sand.u32 %s312, 1
          %s2031 = smul.addr %s2030, 16
          %s2032 = scalar_lea.vmem [#allocation2], %s2031
          %2034 = dma.done %s2029, 256
        $region84: #{tpu_custom_call.1} parent=79 // pred_fallthru
          _
        // Predicated region
        $region85: #{tpu_custom_call.1} parent=79 // pred_check
          %p2035 = pneg %p353
        $region86: #{tpu_custom_call.1} parent=79 // pred_check_branch
          %2037 = sbr.rel (%p2035) target = $region88
        $region87: #{tpu_custom_call.1} parent=79 // pred_region
          %s2038 = sand.u32 %s338, 1
          %s2039 = scalar_lea.sflag [#allocation5], %s2038
          %s2040 = sand.u32 %s338, 1
          %s2041 = smul.addr %s2040, 16
          %s2042 = scalar_lea.vmem [#allocation4], %s2041
          %2044 = dma.done %s2039, 256
        $region88: #{tpu_custom_call.1} parent=79 // pred_fallthru
          _
      $region80: #{tpu_custom_call.1} parent=5 // pred_fallthru
        _
    $region6: #{tpu_custom_call.1} parent=1 // loop_footer
      %s30 = sadd.s32 1, %s26
    $region7: #{tpu_custom_call.1} parent=1 // loop_footer_branch
      %25 = sbr.rel target = $region3
    $region8: #{tpu_custom_call.1} parent=1 // loop_exit
      _
    %2045 = vsyncpa [#allocation3], 1
    %s2046 = scalar_lea.sflag [#allocation3], 1
    %2047 = vsyncpa %s2046, 1
    %2048 = vsyncpa [#allocation5], 1
    %s2049 = scalar_lea.sflag [#allocation5], 1
    %2050 = vsyncpa %s2049, 1

</llo_original>
